<compile_context>
chip_gen: v7x
topology: tpu7x:2x2x1
jax: 0.10.0
libtpu: 0.0.40
codegen_flags: <defaults>
</compile_context>

<pallas_src>
import math
import jax
import jax.numpy as jnp
from jax.experimental import pallas as pl
from jax.experimental.pallas import tpu as pltpu  # noqa: F401  (TPU backend)


# ------------------------------------------------------------------
# Single fused DGI forward kernel
# ------------------------------------------------------------------
def dgi_forward(a_hat, features, gcn_params, disc_w, perm):
    """Fused DGI forward. Everything VMEM-resident; returns the scalar loss."""
    n, _ = features.shape
    num_layers = len(gcn_params)

    def kernel(a_ref, x_ref, perm_ref, *rest):
        # rest = (w1, bcat1, w2, bcat2, ..., wT, loss_out)
        param_refs = rest[:2 * num_layers]
        wT_ref = rest[2 * num_layers]
        loss_ref = rest[2 * num_layers + 1]

        f32 = jnp.float32
        a = a_ref[...]                     # (N, N) normalized adjacency
        x = x_ref[...]                     # (N, F) node features

        # ---- corruption: fused row-permutation as a matmul ---------------
        # P[i, j] = 1 iff j == perm[i]  ->  v[perm] == P @ v
        # TODO(synk): torch.randperm is re-sampled per forward; here the
        # permutation is a deterministic kernel input.
        perm_col = perm_ref[...]                                   # (N, 1) int32
        col_ids = jax.lax.broadcasted_iota(jnp.int32, (n, n), 1)   # (N, N)
        pmat = (perm_col == col_ids).astype(f32)

        # ---- layer 0: reuse X@W for the corrupted branch ------------------
        # (P @ X) @ W == P @ (X @ W)  -> one fewer matmul than gathering X.
        # TODO(synk): dropout omitted (eval mode / p=0 equivalence).
        w0 = param_refs[0][...]            # (F, H0)
        b0 = param_refs[1][...]            # (1, 2*H0)  (bias pre-doubled)
        xwp = jnp.dot(x, w0, preferred_element_type=f32)           # (N, H0)
        xwn = jnp.dot(pmat, xwp, preferred_element_type=f32)       # X[perm] @ W0
        xw_cat = jnp.concatenate([xwp, xwn], axis=1)               # (N, 2*H0)
        h_cat = jnp.maximum(
            jnp.dot(a, xw_cat, preferred_element_type=f32) + b0, 0.0)

        # ---- remaining GCN layers (pos/neg fused along the lane axis) -----
        for layer in range(1, num_layers):
            w = param_refs[2 * layer][...]         # (Hin, Hout)
            b = param_refs[2 * layer + 1][...]     # (1,  2*Hout)
            h_in = w.shape[0]
            hp = h_cat[:, :h_in]
            hn = h_cat[:, h_in:]
            xw_cat = jnp.concatenate(
                [jnp.dot(hp, w, preferred_element_type=f32),
                 jnp.dot(hn, w, preferred_element_type=f32)], axis=1)
            h_cat = jnp.maximum(
                jnp.dot(a, xw_cat, preferred_element_type=f32) + b, 0.0)

        h_last = param_refs[2 * num_layers - 2].shape[1]
        hp = h_cat[:, :h_last]                                      # positive
        hn = h_cat[:, h_last:]                                      # corrupted

        # ---- DGI head ------------------------------------------------------
        mean_pos = jnp.mean(hp, axis=0, keepdims=True)              # (1, H)
        summary = pl.reciprocal(1.0 + jnp.exp(-mean_pos), approx=True)  # sigmoid
        # discriminator: logits = H @ (W_disc @ s) == rowsum(H * (s @ W_disc^T))
        ws = jnp.dot(summary, wT_ref[...], preferred_element_type=f32)  # (1, H)
        pos_logits = jnp.sum(hp * ws, axis=-1, keepdims=True)       # (N, 1)
        neg_logits = jnp.sum(hn * ws, axis=-1, keepdims=True)       # (N, 1)

        # BCEWithLogits (mean reduction), stable: max(x,0) - x*z + log(1+exp(-|x|))
        l1 = jnp.mean(jnp.maximum(pos_logits, 0.0) - pos_logits
                      + jnp.log(1.0 + jnp.exp(-jnp.abs(pos_logits))))
        l2 = jnp.mean(jnp.maximum(neg_logits, 0.0)
                      + jnp.log(1.0 + jnp.exp(-jnp.abs(neg_logits))))
        loss_ref[...] = jnp.reshape(l1 + l2, (1, 1))

    inputs = [a_hat, features, perm.astype(jnp.int32).reshape(n, 1)]
    for w, b in gcn_params:
        inputs.append(w)
        # bias pre-doubled to cover the fused [pos | neg] activation block
        inputs.append(jnp.concatenate([b, b]).reshape(1, -1))
    inputs.append(disc_w.T)   # pre-transposed -> no in-kernel transpose

    loss = pl.pallas_call(
        kernel,
        out_shape=jax.ShapeDtypeStruct((1, 1), jnp.float32),
    )(*inputs)
    return loss[0, 0]


# ------------------------------------------------------------------
# Pure-JAX reference (for validation)
# ------------------------------------------------------------------
def dgi_reference(a_hat, features, gcn_params, disc_w, perm):
    def encode(h):
        for w, b in gcn_params:
            h = jnp.maximum(a_hat @ (h @ w) + b, 0.0)
        return h

    pos = encode(features)
    neg = encode(features[perm])
    summary = jax.nn.sigmoid(pos.mean(axis=0))
    ws = disc_w @ summary
    pos_logits = pos @ ws
    neg_logits = neg @ ws
    l1 = jnp.mean(jnp.maximum(pos_logits, 0.0) - pos_logits
                  + jnp.log1p(jnp.exp(-jnp.abs(pos_logits))))
    l2 = jnp.mean(jnp.maximum(neg_logits, 0.0)
                  + jnp.log1p(jnp.exp(-jnp.abs(neg_logits))))
    return l1 + l2


# ------------------------------------------------------------------
# Deterministic parameter / input construction
# ------------------------------------------------------------------
def build_graph(key, n_nodes):
    # random symmetric adjacency with self-loops, symmetric normalization
    a = (jax.random.uniform(key, (n_nodes, n_nodes)) < 0.08).astype(jnp.float32)
    a = jnp.maximum(a, a.T)
    a = jnp.maximum(a, jnp.eye(n_nodes, dtype=jnp.float32))
    deg = jnp.sum(a, axis=1)
    d_inv_sqrt = 1.0 / jnp.sqrt(deg)
    return a * d_inv_sqrt[:, None] * d_inv_sqrt[None, :]


def init_params(key, in_feats, hidden_dims):
    dims = [in_feats] + list(hidden_dims)
    gcn_params = []
    for i in range(len(hidden_dims)):
        key, kw = jax.random.split(key)
        fan_in, fan_out = dims[i], dims[i + 1]
        bound = math.sqrt(6.0 / (fan_in + fan_out))      # xavier-uniform
        w = jax.random.uniform(kw, (fan_in, fan_out), jnp.float32,
                               minval=-bound, maxval=bound)
        b = jnp.zeros((fan_out,), jnp.float32)
        gcn_params.append((w, b))
    key, kd = jax.random.split(key)
    h = hidden_dims[-1]
    dbound = 1.0 / math.sqrt(h)                          # Discriminator.uniform
    disc_w = jax.random.uniform(kd, (h, h), jnp.float32,
                                minval=-dbound, maxval=dbound)
    return gcn_params, disc_w


if __name__ == "__main__":
    N_NODES = 128
    IN_FEATS = 32
    HIDDEN_DIMS = [32, 32]

    key = jax.random.PRNGKey(0)
    k_graph, k_feat, k_param, k_perm = jax.random.split(key, 4)

    a_hat = build_graph(k_graph, N_NODES)
    features = jax.random.normal(k_feat, (N_NODES, IN_FEATS), jnp.float32)
    gcn_params, disc_w = init_params(k_param, IN_FEATS, HIDDEN_DIMS)
    perm = jax.random.permutation(k_perm, N_NODES)

    loss = dgi_forward(a_hat, features, gcn_params, disc_w, perm)
    loss = jax.block_until_ready(loss)
    assert jnp.isfinite(loss), f"non-finite loss: {loss}"

    ref = jax.block_until_ready(
        dgi_reference(a_hat, features, gcn_params, disc_w, perm))
    assert jnp.allclose(loss, ref, atol=2e-2, rtol=2e-2), (loss, ref)
    print("KERNEL_OK")
</pallas_src>

<mosaic_0001>
module attributes {stable_mosaic.version = 11 : i64} {
  func.func @kernel(%arg0: memref<128x128xf32, #tpu.memory_space<vmem>>, %arg1: memref<128x32xf32, #tpu.memory_space<vmem>>, %arg2: memref<128x1xi32, #tpu.memory_space<vmem>>, %arg3: memref<32x32xf32, #tpu.memory_space<vmem>>, %arg4: memref<1x64xf32, #tpu.memory_space<vmem>>, %arg5: memref<32x32xf32, #tpu.memory_space<vmem>>, %arg6: memref<1x64xf32, #tpu.memory_space<vmem>>, %arg7: memref<32x32xf32, #tpu.memory_space<vmem>>, %arg8: memref<1x1xf32, #tpu.memory_space<vmem>>) attributes {dimension_semantics = [], scalar_prefetch = 0 : i64, scratch_operands = 0 : i64, tpu.core_type = #tpu.core_type<tc>} {
    %c0 = arith.constant 0 : index
    %c0_0 = arith.constant 0 : index
    %0 = vector.load %arg0[%c0, %c0_0] : memref<128x128xf32, #tpu.memory_space<vmem>>, vector<128x128xf32>
    %c0_1 = arith.constant 0 : index
    %c0_2 = arith.constant 0 : index
    %1 = vector.load %arg1[%c0_1, %c0_2] : memref<128x32xf32, #tpu.memory_space<vmem>>, vector<128x32xf32>
    %c0_3 = arith.constant 0 : index
    %c0_4 = arith.constant 0 : index
    %2 = vector.load %arg2[%c0_3, %c0_4] : memref<128x1xi32, #tpu.memory_space<vmem>>, vector<128x1xi32>
    %3 = tpu.iota {dimensions = array<i32: 1>} : vector<128x128xi32>
    %4 = vector.broadcast %2 : vector<128x1xi32> to vector<128x128xi32>
    %5 = arith.cmpi eq, %4, %3 : vector<128x128xi32>
    %6 = arith.extui %5 : vector<128x128xi1> to vector<128x128xi32>
    %7 = arith.sitofp %6 : vector<128x128xi32> to vector<128x128xf32>
    %c0_5 = arith.constant 0 : index
    %c0_6 = arith.constant 0 : index
    %8 = vector.load %arg3[%c0_5, %c0_6] : memref<32x32xf32, #tpu.memory_space<vmem>>, vector<32x32xf32>
    %c0_7 = arith.constant 0 : index
    %c0_8 = arith.constant 0 : index
    %9 = vector.load %arg4[%c0_7, %c0_8] : memref<1x64xf32, #tpu.memory_space<vmem>>, vector<1x64xf32>
    %cst = arith.constant dense<0.000000e+00> : vector<128x32xf32>
    %10 = tpu.matmul %1, %8, %cst {dimension_numbers = #tpu.dot_dimension_numbers<[1], [0], [0], [1], [0, 0, 1, 1], [], []>} : vector<128x32xf32>, vector<32x32xf32>, vector<128x32xf32> -> vector<128x32xf32>
    %cst_9 = arith.constant dense<0.000000e+00> : vector<128x32xf32>
    %11 = tpu.matmul %7, %10, %cst_9 {dimension_numbers = #tpu.dot_dimension_numbers<[1], [0], [0], [1], [0, 0, 1, 1], [], []>} : vector<128x128xf32>, vector<128x32xf32>, vector<128x32xf32> -> vector<128x32xf32>
    %12 = tpu.concatenate %10, %11 in 1 : vector<128x32xf32>, vector<128x32xf32> -> vector<128x64xf32>
    %cst_10 = arith.constant dense<0.000000e+00> : vector<128x64xf32>
    %13 = tpu.matmul %0, %12, %cst_10 {dimension_numbers = #tpu.dot_dimension_numbers<[1], [0], [0], [1], [0, 0, 1, 1], [], []>} : vector<128x128xf32>, vector<128x64xf32>, vector<128x64xf32> -> vector<128x64xf32>
    %14 = vector.broadcast %9 : vector<1x64xf32> to vector<128x64xf32>
    %15 = arith.addf %13, %14 : vector<128x64xf32>
    %cst_11 = arith.constant 0.000000e+00 : f32
    %16 = vector.broadcast %cst_11 : f32 to vector<128x64xf32>
    %17 = arith.maximumf %15, %16 : vector<128x64xf32>
    %c0_12 = arith.constant 0 : index
    %c0_13 = arith.constant 0 : index
    %18 = vector.load %arg5[%c0_12, %c0_13] : memref<32x32xf32, #tpu.memory_space<vmem>>, vector<32x32xf32>
    %c0_14 = arith.constant 0 : index
    %c0_15 = arith.constant 0 : index
    %19 = vector.load %arg6[%c0_14, %c0_15] : memref<1x64xf32, #tpu.memory_space<vmem>>, vector<1x64xf32>
    %20 = vector.extract_strided_slice %17 {offsets = [0, 0], sizes = [128, 32], strides = [1, 1]} : vector<128x64xf32> to vector<128x32xf32>
    %21 = vector.extract_strided_slice %17 {offsets = [0, 32], sizes = [128, 32], strides = [1, 1]} : vector<128x64xf32> to vector<128x32xf32>
    %cst_16 = arith.constant dense<0.000000e+00> : vector<128x32xf32>
    %22 = tpu.matmul %20, %18, %cst_16 {dimension_numbers = #tpu.dot_dimension_numbers<[1], [0], [0], [1], [0, 0, 1, 1], [], []>} : vector<128x32xf32>, vector<32x32xf32>, vector<128x32xf32> -> vector<128x32xf32>
    %cst_17 = arith.constant dense<0.000000e+00> : vector<128x32xf32>
    %23 = tpu.matmul %21, %18, %cst_17 {dimension_numbers = #tpu.dot_dimension_numbers<[1], [0], [0], [1], [0, 0, 1, 1], [], []>} : vector<128x32xf32>, vector<32x32xf32>, vector<128x32xf32> -> vector<128x32xf32>
    %24 = tpu.concatenate %22, %23 in 1 : vector<128x32xf32>, vector<128x32xf32> -> vector<128x64xf32>
    %cst_18 = arith.constant dense<0.000000e+00> : vector<128x64xf32>
    %25 = tpu.matmul %0, %24, %cst_18 {dimension_numbers = #tpu.dot_dimension_numbers<[1], [0], [0], [1], [0, 0, 1, 1], [], []>} : vector<128x128xf32>, vector<128x64xf32>, vector<128x64xf32> -> vector<128x64xf32>
    %26 = vector.broadcast %19 : vector<1x64xf32> to vector<128x64xf32>
    %27 = arith.addf %25, %26 : vector<128x64xf32>
    %cst_19 = arith.constant 0.000000e+00 : f32
    %28 = vector.broadcast %cst_19 : f32 to vector<128x64xf32>
    %29 = arith.maximumf %27, %28 : vector<128x64xf32>
    %30 = vector.extract_strided_slice %29 {offsets = [0, 0], sizes = [128, 32], strides = [1, 1]} : vector<128x64xf32> to vector<128x32xf32>
    %31 = vector.extract_strided_slice %29 {offsets = [0, 32], sizes = [128, 32], strides = [1, 1]} : vector<128x64xf32> to vector<128x32xf32>
    %cst_20 = arith.constant dense<0.000000e+00> : vector<32xf32>
    %32 = vector.multi_reduction <add>, %30, %cst_20 [0] : vector<128x32xf32> to vector<32xf32>
    %33 = vector.shape_cast %32 : vector<32xf32> to vector<1x32xf32>
    %cst_21 = arith.constant 1.280000e+02 : f32
    %34 = vector.broadcast %cst_21 : f32 to vector<1x32xf32>
    %35 = arith.divf %33, %34 : vector<1x32xf32>
    %cst_22 = arith.constant 0.000000e+00 : f32
    %36 = vector.broadcast %cst_22 : f32 to vector<1x32xf32>
    %37 = arith.subf %36, %35 : vector<1x32xf32>
    %38 = math.exp %37 : vector<1x32xf32>
    %cst_23 = arith.constant 1.000000e+00 : f32
    %39 = vector.broadcast %cst_23 : f32 to vector<1x32xf32>
    %40 = arith.addf %39, %38 : vector<1x32xf32>
    %41 = tpu.reciprocal %40 {approx = true} : vector<1x32xf32> -> vector<1x32xf32>
    %c0_24 = arith.constant 0 : index
    %c0_25 = arith.constant 0 : index
    %42 = vector.load %arg7[%c0_24, %c0_25] : memref<32x32xf32, #tpu.memory_space<vmem>>, vector<32x32xf32>
    %cst_26 = arith.constant dense<0.000000e+00> : vector<1x32xf32>
    %43 = tpu.matmul %41, %42, %cst_26 {dimension_numbers = #tpu.dot_dimension_numbers<[1], [0], [0], [1], [0, 0, 1, 1], [], []>} : vector<1x32xf32>, vector<32x32xf32>, vector<1x32xf32> -> vector<1x32xf32>
    %44 = vector.broadcast %43 : vector<1x32xf32> to vector<128x32xf32>
    %45 = arith.mulf %30, %44 : vector<128x32xf32>
    %cst_27 = arith.constant dense<0.000000e+00> : vector<128xf32>
    %46 = vector.multi_reduction <add>, %45, %cst_27 [1] : vector<128x32xf32> to vector<128xf32>
    %47 = vector.shape_cast %46 : vector<128xf32> to vector<128x1xf32>
    %48 = vector.broadcast %43 : vector<1x32xf32> to vector<128x32xf32>
    %49 = arith.mulf %31, %48 : vector<128x32xf32>
    %cst_28 = arith.constant dense<0.000000e+00> : vector<128xf32>
    %50 = vector.multi_reduction <add>, %49, %cst_28 [1] : vector<128x32xf32> to vector<128xf32>
    %51 = vector.shape_cast %50 : vector<128xf32> to vector<128x1xf32>
    %cst_29 = arith.constant 0.000000e+00 : f32
    %52 = vector.broadcast %cst_29 : f32 to vector<128x1xf32>
    %53 = arith.maximumf %47, %52 : vector<128x1xf32>
    %54 = arith.subf %53, %47 : vector<128x1xf32>
    %55 = math.absf %47 : vector<128x1xf32>
    %cst_30 = arith.constant 0.000000e+00 : f32
    %56 = vector.broadcast %cst_30 : f32 to vector<128x1xf32>
    %57 = arith.subf %56, %55 : vector<128x1xf32>
    %58 = math.exp %57 : vector<128x1xf32>
    %cst_31 = arith.constant 1.000000e+00 : f32
    %59 = vector.broadcast %cst_31 : f32 to vector<128x1xf32>
    %60 = arith.addf %59, %58 : vector<128x1xf32>
    %61 = math.log %60 : vector<128x1xf32>
    %62 = arith.addf %54, %61 : vector<128x1xf32>
    %63 = vector.shape_cast %62 : vector<128x1xf32> to vector<1x128x1xf32>
    %cst_32 = arith.constant dense<0.000000e+00> : vector<1xf32>
    %64 = vector.multi_reduction <add>, %63, %cst_32 [1, 2] : vector<1x128x1xf32> to vector<1xf32>
    %65 = vector.shape_cast %64 : vector<1xf32> to vector<1x1x1xf32>
    %66 = vector.extract %65[0, 0, 0] : f32 from vector<1x1x1xf32>
    %cst_33 = arith.constant 1.280000e+02 : f32
    %67 = arith.divf %66, %cst_33 : f32
    %cst_34 = arith.constant 0.000000e+00 : f32
    %68 = vector.broadcast %cst_34 : f32 to vector<128x1xf32>
    %69 = arith.maximumf %51, %68 : vector<128x1xf32>
    %70 = math.absf %51 : vector<128x1xf32>
    %cst_35 = arith.constant 0.000000e+00 : f32
    %71 = vector.broadcast %cst_35 : f32 to vector<128x1xf32>
    %72 = arith.subf %71, %70 : vector<128x1xf32>
    %73 = math.exp %72 : vector<128x1xf32>
    %cst_36 = arith.constant 1.000000e+00 : f32
    %74 = vector.broadcast %cst_36 : f32 to vector<128x1xf32>
    %75 = arith.addf %74, %73 : vector<128x1xf32>
    %76 = math.log %75 : vector<128x1xf32>
    %77 = arith.addf %69, %76 : vector<128x1xf32>
    %78 = vector.shape_cast %77 : vector<128x1xf32> to vector<1x128x1xf32>
    %cst_37 = arith.constant dense<0.000000e+00> : vector<1xf32>
    %79 = vector.multi_reduction <add>, %78, %cst_37 [1, 2] : vector<1x128x1xf32> to vector<1xf32>
    %80 = vector.shape_cast %79 : vector<1xf32> to vector<1x1x1xf32>
    %81 = vector.extract %80[0, 0, 0] : f32 from vector<1x1x1xf32>
    %cst_38 = arith.constant 1.280000e+02 : f32
    %82 = arith.divf %81, %cst_38 : f32
    %83 = arith.addf %67, %82 : f32
    %84 = vector.broadcast %83 : f32 to vector<1x1xf32>
    %c0_39 = arith.constant 0 : index
    %c0_40 = arith.constant 0 : index
    %85 = vector.load %arg8[%c0_39, %c0_40] : memref<1x1xf32, #tpu.memory_space<vmem>>, vector<1x1xf32>
    tpu.vector_store %arg8[%c0_39, %c0_40], %84 {strides = array<i32>} : memref<1x1xf32, #tpu.memory_space<vmem>>, vector<1x1xf32>,
    return
  }
}

</mosaic_0001>

<llo_original>
// kernel: tpu_custom_call.1
$region0: #{tpu_custom_call.1}
  #allocation0 [shape = 'u32[]', space=smem, size = 0x4, offset = 0x4, fixed_abs, tag = 'smem constant byte address 0x4 - core index']
  #allocation1 [shape = 'u32[144,128]{1,0:T(1,128)}', space=vmem, size = 0x12000, scoped, tag = 'internal scratch']
  %s0 = inlined_call_operand.vmem [shape: f32[128,128], index: 0, kind: input, shape index: {}]
  %s1 = inlined_call_operand.vmem [shape: f32[128,32], index: 1, kind: input, shape index: {}]
  %s2 = inlined_call_operand.vmem [shape: s32[128,1], index: 2, kind: input, shape index: {}]
  %s3 = inlined_call_operand.vmem [shape: f32[32,32], index: 3, kind: input, shape index: {}]
  %s4 = inlined_call_operand.vmem [shape: f32[1,64], index: 4, kind: input, shape index: {}]
  %s5 = inlined_call_operand.vmem [shape: f32[32,32], index: 5, kind: input, shape index: {}]
  %s6 = inlined_call_operand.vmem [shape: f32[1,64], index: 6, kind: input, shape index: {}]
  %s7 = inlined_call_operand.vmem [shape: f32[32,32], index: 7, kind: input, shape index: {}]
  %s8 = inlined_call_operand.hbm [shape: f32[1,1], index: 8, kind: output, shape index: {}]
  %s9 = sld [smem:[#allocation0]]
  $region42: #{tpu_custom_call.1} parent=0
    _
  %s11 = ssub.s32 1, %s9
  %s12 = scalar_select 0, %s11, %s9
  $region1: #{tpu_custom_call.1} parent=0
    #allocation2 [shape = 'u8[512]{0}', space=vmem, size = 0x400, scoped, tag = 'output window, operand 0, single buffered']
    #allocation3 [shape = 's32[1]{0}', space=sflag, size = 0x4, scoped, tag = 'scoped memory for tpu_custom_call.1']
    %13 = vsyncpa [#allocation3], 0
    // Predicated region
    $region2: #{tpu_custom_call.1} parent=1 // pred_check
      _
    $region3: #{tpu_custom_call.1} parent=1 // pred_check_branch
      %15 = sbr.rel (0) target = $region5
    $region4: #{tpu_custom_call.1} parent=1 // pred_region
      _
    $region5: #{tpu_custom_call.1} parent=1 // pred_fallthru
      _
    // Predicated region
    $region6: #{tpu_custom_call.1} parent=1 // pred_check
      _
    $region7: #{tpu_custom_call.1} parent=1 // pred_check_branch
      %17 = sbr.rel (0) target = $region9
    $region8: #{tpu_custom_call.1} parent=1 // pred_region
      _
    $region9: #{tpu_custom_call.1} parent=1 // pred_fallthru
      _
    // Predicated region
    $region10: #{tpu_custom_call.1} parent=1 // pred_check
      _
    $region11: #{tpu_custom_call.1} parent=1 // pred_check_branch
      %19 = sbr.rel (0) target = $region13
    $region12: #{tpu_custom_call.1} parent=1 // pred_region
      _
    $region13: #{tpu_custom_call.1} parent=1 // pred_fallthru
      _
    // Predicated region
    $region14: #{tpu_custom_call.1} parent=1 // pred_check
      _
    $region15: #{tpu_custom_call.1} parent=1 // pred_check_branch
      %21 = sbr.rel (0) target = $region17
    $region16: #{tpu_custom_call.1} parent=1 // pred_region
      _
    $region17: #{tpu_custom_call.1} parent=1 // pred_fallthru
      _
    // Predicated region
    $region18: #{tpu_custom_call.1} parent=1 // pred_check
      _
    $region19: #{tpu_custom_call.1} parent=1 // pred_check_branch
      %23 = sbr.rel (0) target = $region21
    $region20: #{tpu_custom_call.1} parent=1 // pred_region
      _
    $region21: #{tpu_custom_call.1} parent=1 // pred_fallthru
      _
    // Predicated region
    $region22: #{tpu_custom_call.1} parent=1 // pred_check
      _
    $region23: #{tpu_custom_call.1} parent=1 // pred_check_branch
      %25 = sbr.rel (0) target = $region25
    $region24: #{tpu_custom_call.1} parent=1 // pred_region
      _
    $region25: #{tpu_custom_call.1} parent=1 // pred_fallthru
      _
    // Predicated region
    $region26: #{tpu_custom_call.1} parent=1 // pred_check
      _
    $region27: #{tpu_custom_call.1} parent=1 // pred_check_branch
      %27 = sbr.rel (0) target = $region29
    $region28: #{tpu_custom_call.1} parent=1 // pred_region
      _
    $region29: #{tpu_custom_call.1} parent=1 // pred_fallthru
      _
    // Predicated region
    $region30: #{tpu_custom_call.1} parent=1 // pred_check
      _
    $region31: #{tpu_custom_call.1} parent=1 // pred_check_branch
      %29 = sbr.rel (0) target = $region33
    $region32: #{tpu_custom_call.1} parent=1 // pred_region
      _
    $region33: #{tpu_custom_call.1} parent=1 // pred_fallthru
      _
    %v30 = vld [vmem:[%s0] sm:$0xff]
    %v31 = vld [vmem:[%s0 + $0x8] sm:$0xff]
    %v32 = vld [vmem:[%s0 + $0x10] sm:$0xff]
    %v33 = vld [vmem:[%s0 + $0x18] sm:$0xff]
    %v34 = vld [vmem:[%s0 + $0x20] sm:$0xff]
    %v35 = vld [vmem:[%s0 + $0x28] sm:$0xff]
    %v36 = vld [vmem:[%s0 + $0x30] sm:$0xff]
    %v37 = vld [vmem:[%s0 + $0x38] sm:$0xff]
    %v38 = vld [vmem:[%s0 + $0x40] sm:$0xff]
    %v39 = vld [vmem:[%s0 + $0x48] sm:$0xff]
    %v40 = vld [vmem:[%s0 + $0x50] sm:$0xff]
    %v41 = vld [vmem:[%s0 + $0x58] sm:$0xff]
    %v42 = vld [vmem:[%s0 + $0x60] sm:$0xff]
    %v43 = vld [vmem:[%s0 + $0x68] sm:$0xff]
    %v44 = vld [vmem:[%s0 + $0x70] sm:$0xff]
    %v45 = vld [vmem:[%s0 + $0x78] sm:$0xff]
    %v46 = vld [vmem:[%s1] sm:$0xff]
    %v47 = vld [vmem:[%s1 + $0x8] sm:$0xff]
    %v48 = vld [vmem:[%s1 + $0x10] sm:$0xff]
    %v49 = vld [vmem:[%s1 + $0x18] sm:$0xff]
    %v50 = vld [vmem:[%s1 + $0x20] sm:$0xff]
    %v51 = vld [vmem:[%s1 + $0x28] sm:$0xff]
    %v52 = vld [vmem:[%s1 + $0x30] sm:$0xff]
    %v53 = vld [vmem:[%s1 + $0x38] sm:$0xff]
    %v54 = vld [vmem:[%s1 + $0x40] sm:$0xff]
    %v55 = vld [vmem:[%s1 + $0x48] sm:$0xff]
    %v56 = vld [vmem:[%s1 + $0x50] sm:$0xff]
    %v57 = vld [vmem:[%s1 + $0x58] sm:$0xff]
    %v58 = vld [vmem:[%s1 + $0x60] sm:$0xff]
    %v59 = vld [vmem:[%s1 + $0x68] sm:$0xff]
    %v60 = vld [vmem:[%s1 + $0x70] sm:$0xff]
    %v61 = vld [vmem:[%s1 + $0x78] sm:$0xff]
    %v62 = vld [vmem:[%s2] sm:$0xff]
    %v63 = vld [vmem:[%s2 + $0x8] sm:$0xff]
    %v64 = vld [vmem:[%s2 + $0x10] sm:$0xff]
    %v65 = vld [vmem:[%s2 + $0x18] sm:$0xff]
    %v66 = vld [vmem:[%s2 + $0x20] sm:$0xff]
    %v67 = vld [vmem:[%s2 + $0x28] sm:$0xff]
    %v68 = vld [vmem:[%s2 + $0x30] sm:$0xff]
    %v69 = vld [vmem:[%s2 + $0x38] sm:$0xff]
    %v70 = vld [vmem:[%s2 + $0x40] sm:$0xff]
    %v71 = vld [vmem:[%s2 + $0x48] sm:$0xff]
    %v72 = vld [vmem:[%s2 + $0x50] sm:$0xff]
    %v73 = vld [vmem:[%s2 + $0x58] sm:$0xff]
    %v74 = vld [vmem:[%s2 + $0x60] sm:$0xff]
    %v75 = vld [vmem:[%s2 + $0x68] sm:$0xff]
    %v76 = vld [vmem:[%s2 + $0x70] sm:$0xff]
    %v77 = vld [vmem:[%s2 + $0x78] sm:$0xff]
    %v78 = vlaneseq
    %v79 = vand.u32 %v78, 127
    %80 = vset.pattern.permute.xlu0 0
    %81 = vperm.xlu0 %80, %v62
    %v82 = vpop.permute.xlu0 %81
    %83 = vset.pattern.permute.xlu0 0
    %84 = vperm.xlu0 %83, %v63
    %v85 = vpop.permute.xlu0 %84
    %86 = vset.pattern.permute.xlu0 0
    %87 = vperm.xlu0 %86, %v64
    %v88 = vpop.permute.xlu0 %87
    %89 = vset.pattern.permute.xlu0 0
    %90 = vperm.xlu0 %89, %v65
    %v91 = vpop.permute.xlu0 %90
    %92 = vset.pattern.permute.xlu0 0
    %93 = vperm.xlu0 %92, %v66
    %v94 = vpop.permute.xlu0 %93
    %95 = vset.pattern.permute.xlu0 0
    %96 = vperm.xlu0 %95, %v67
    %v97 = vpop.permute.xlu0 %96
    %98 = vset.pattern.permute.xlu0 0
    %99 = vperm.xlu0 %98, %v68
    %v100 = vpop.permute.xlu0 %99
    %101 = vset.pattern.permute.xlu0 0
    %102 = vperm.xlu0 %101, %v69
    %v103 = vpop.permute.xlu0 %102
    %104 = vset.pattern.permute.xlu0 0
    %105 = vperm.xlu0 %104, %v70
    %v106 = vpop.permute.xlu0 %105
    %107 = vset.pattern.permute.xlu0 0
    %108 = vperm.xlu0 %107, %v71
    %v109 = vpop.permute.xlu0 %108
    %110 = vset.pattern.permute.xlu0 0
    %111 = vperm.xlu0 %110, %v72
    %v112 = vpop.permute.xlu0 %111
    %113 = vset.pattern.permute.xlu0 0
    %114 = vperm.xlu0 %113, %v73
    %v115 = vpop.permute.xlu0 %114
    %116 = vset.pattern.permute.xlu0 0
    %117 = vperm.xlu0 %116, %v74
    %v118 = vpop.permute.xlu0 %117
    %119 = vset.pattern.permute.xlu0 0
    %120 = vperm.xlu0 %119, %v75
    %v121 = vpop.permute.xlu0 %120
    %122 = vset.pattern.permute.xlu0 0
    %123 = vperm.xlu0 %122, %v76
    %v124 = vpop.permute.xlu0 %123
    %125 = vset.pattern.permute.xlu0 0
    %126 = vperm.xlu0 %125, %v77
    %v127 = vpop.permute.xlu0 %126
    %vm128 = vcmp.eq.s32.totalorder %v82, %v79
    %vm129 = vcmp.eq.s32.totalorder %v85, %v79
    %vm130 = vcmp.eq.s32.totalorder %v88, %v79
    %vm131 = vcmp.eq.s32.totalorder %v91, %v79
    %vm132 = vcmp.eq.s32.totalorder %v94, %v79
    %vm133 = vcmp.eq.s32.totalorder %v97, %v79
    %vm134 = vcmp.eq.s32.totalorder %v100, %v79
    %vm135 = vcmp.eq.s32.totalorder %v103, %v79
    %vm136 = vcmp.eq.s32.totalorder %v106, %v79
    %vm137 = vcmp.eq.s32.totalorder %v109, %v79
    %vm138 = vcmp.eq.s32.totalorder %v112, %v79
    %vm139 = vcmp.eq.s32.totalorder %v115, %v79
    %vm140 = vcmp.eq.s32.totalorder %v118, %v79
    %vm141 = vcmp.eq.s32.totalorder %v121, %v79
    %vm142 = vcmp.eq.s32.totalorder %v124, %v79
    %vm143 = vcmp.eq.s32.totalorder %v127, %v79
    %v144 = vsel %vm128, 1, 0
    %v145 = vsel %vm129, 1, 0
    %v146 = vsel %vm130, 1, 0
    %v147 = vsel %vm131, 1, 0
    %v148 = vsel %vm132, 1, 0
    %v149 = vsel %vm133, 1, 0
    %v150 = vsel %vm134, 1, 0
    %v151 = vsel %vm135, 1, 0
    %v152 = vsel %vm136, 1, 0
    %v153 = vsel %vm137, 1, 0
    %v154 = vsel %vm138, 1, 0
    %v155 = vsel %vm139, 1, 0
    %v156 = vsel %vm140, 1, 0
    %v157 = vsel %vm141, 1, 0
    %v158 = vsel %vm142, 1, 0
    %v159 = vsel %vm143, 1, 0
    %v160 = vcvt.s32.f32 %v144
    %v161 = vcvt.s32.f32 %v145
    %v162 = vcvt.s32.f32 %v146
    %v163 = vcvt.s32.f32 %v147
    %v164 = vcvt.s32.f32 %v148
    %v165 = vcvt.s32.f32 %v149
    %v166 = vcvt.s32.f32 %v150
    %v167 = vcvt.s32.f32 %v151
    %v168 = vcvt.s32.f32 %v152
    %v169 = vcvt.s32.f32 %v153
    %v170 = vcvt.s32.f32 %v154
    %v171 = vcvt.s32.f32 %v155
    %v172 = vcvt.s32.f32 %v156
    %v173 = vcvt.s32.f32 %v157
    %v174 = vcvt.s32.f32 %v158
    %v175 = vcvt.s32.f32 %v159
    %v176 = vld [vmem:[%s3] sm:$0xff]
    %v177 = vld [vmem:[%s3 + $0x8] sm:$0xff]
    %v178 = vld [vmem:[%s3 + $0x10] sm:$0xff]
    %v179 = vld [vmem:[%s3 + $0x18] sm:$0xff]
    %v180 = vld [vmem:[%s4] sm:$0x1]
    %vm181 = vcmask 261120
    %v183 = vsel %vm181, %v46, 0
    %v186 = vsel %vm181, %v47, 0
    %v189 = vsel %vm181, %v48, 0
    %v192 = vsel %vm181, %v49, 0
    %v195 = vsel %vm181, %v50, 0
    %v198 = vsel %vm181, %v51, 0
    %v201 = vsel %vm181, %v52, 0
    %v204 = vsel %vm181, %v53, 0
    %v207 = vsel %vm181, %v54, 0
    %v210 = vsel %vm181, %v55, 0
    %v213 = vsel %vm181, %v56, 0
    %v216 = vsel %vm181, %v57, 0
    %v219 = vsel %vm181, %v58, 0
    %v222 = vsel %vm181, %v59, 0
    %v225 = vsel %vm181, %v60, 0
    %v228 = vsel %vm181, %v61, 0
    %230 = vmatprep.subr.mxu0 0.0
    %231 = vmatpush1.msra.mxu0 %v176
    %232 = vmatprep.subr.mxu0 0.0
    %233 = vmatpush1.msra.mxu0 %v177
    %234 = vmatprep.subr.mxu0 0.0
    %235 = vmatpush1.msra.mxu0 %v178
    %236 = vmatprep.subr.mxu0 0.0
    %237 = vmatpush1.msra.mxu0 %v179
    %238 = vmatprep.subr.mxu0 0.0
    %239 = vmatpush1.msra.mxu0 0.0
    %240 = vmatprep.subr.mxu0 0.0
    %241 = vmatpush1.msra.mxu0 0.0
    %242 = vmatprep.subr.mxu0 0.0
    %243 = vmatpush1.msra.mxu0 0.0
    %244 = vmatprep.subr.mxu0 0.0
    %245 = vmatpush1.msra.mxu0 0.0
    %246 = vmatprep.subr.mxu0 0.0
    %247 = vmatpush1.msra.mxu0 0.0
    %248 = vmatprep.subr.mxu0 0.0
    %249 = vmatpush1.msra.mxu0 0.0
    %250 = vmatprep.subr.mxu0 0.0
    %251 = vmatpush1.msra.mxu0 0.0
    %252 = vmatprep.subr.mxu0 0.0
    %253 = vmatpush1.msra.mxu0 0.0
    %254 = vmatprep.subr.mxu0 0.0
    %255 = vmatpush1.msra.mxu0 0.0
    %256 = vmatprep.subr.mxu0 0.0
    %257 = vmatpush1.msra.mxu0 0.0
    %258 = vmatprep.subr.mxu0 0.0
    %259 = vmatpush1.msra.mxu0 0.0
    %260 = vmatprep.subr.mxu0 0.0
    %261 = vmatpush1.msra.mxu0 0.0
    %262 = vmatprep.subr.mxu0 0.0
    %263 = vmatpush1.msra.mxu0 0.0
    %264 = vmatprep.subr.mxu0 0.0
    %265 = vmatpush1.msra.mxu0 0.0
    %266 = vmatprep.subr.mxu0 0.0
    %267 = vmatpush1.msra.mxu0 0.0
    %268 = vmatprep.subr.mxu0 0.0
    %269 = vmatpush1.msra.mxu0 0.0
    %270 = vmatprep.subr.mxu0 0.0
    %271 = vmatpush1.msra.mxu0 0.0
    %272 = vmatprep.subr.mxu0 0.0
    %273 = vmatpush1.msra.mxu0 0.0
    %274 = vmatprep.subr.mxu0 0.0
    %275 = vmatpush1.msra.mxu0 0.0
    %276 = vmatprep.subr.mxu0 0.0
    %277 = vmatpush1.msra.mxu0 0.0
    %278 = vmatprep.subr.mxu0 0.0
    %279 = vmatpush1.msra.mxu0 0.0
    %280 = vmatprep.subr.mxu0 0.0
    %281 = vmatpush1.msra.mxu0 0.0
    %282 = vmatprep.subr.mxu0 0.0
    %283 = vmatpush1.msra.mxu0 0.0
    %284 = vmatprep.subr.mxu0 0.0
    %285 = vmatpush1.msra.mxu0 0.0
    %286 = vmatprep.subr.mxu0 0.0
    %287 = vmatpush1.msra.mxu0 0.0
    %288 = vmatprep.subr.mxu0 0.0
    %289 = vmatpush1.msra.mxu0 0.0
    %290 = vmatprep.subr.mxu0 0.0
    %291 = vmatpush1.msra.mxu0 0.0
    %292 = vmatprep.subr.mxu0 0.0
    %293 = vmatpush1.msra.mxu0 0.0
    %294 = vmatprep.mubr.f32.mxu0 0.0
    %295 = vmatmul.mubr.f32.gmra.mrb[0].mxu0 %v183
    %v296 = vpop.f32.mrb[0].mxu0
    %v297 = vadd.f32 0.0, %v296
    %v298 = vpop.f32.mrb[0].mxu0
    %299 = vmatprep.mubr.f32.mxu0 0.0
    %300 = vmatmul.mubr.f32.gmra.mrb[0].mxu0 %v186
    %v301 = vpop.f32.mrb[0].mxu0
    %v302 = vadd.f32 0.0, %v301
    %v303 = vpop.f32.mrb[0].mxu0
    %304 = vmatprep.mubr.f32.mxu0 0.0
    %305 = vmatmul.mubr.f32.gmra.mrb[0].mxu0 %v189
    %v306 = vpop.f32.mrb[0].mxu0
    %v307 = vadd.f32 0.0, %v306
    %v308 = vpop.f32.mrb[0].mxu0
    %309 = vmatprep.mubr.f32.mxu0 0.0
    %310 = vmatmul.mubr.f32.gmra.mrb[0].mxu0 %v192
    %v311 = vpop.f32.mrb[0].mxu0
    %v312 = vadd.f32 0.0, %v311
    %v313 = vpop.f32.mrb[0].mxu0
    %314 = vmatprep.mubr.f32.mxu0 0.0
    %315 = vmatmul.mubr.f32.gmra.mrb[0].mxu0 %v195
    %v316 = vpop.f32.mrb[0].mxu0
    %v317 = vadd.f32 0.0, %v316
    %v318 = vpop.f32.mrb[0].mxu0
    %319 = vmatprep.mubr.f32.mxu0 0.0
    %320 = vmatmul.mubr.f32.gmra.mrb[0].mxu0 %v198
    %v321 = vpop.f32.mrb[0].mxu0
    %v322 = vadd.f32 0.0, %v321
    %v323 = vpop.f32.mrb[0].mxu0
    %324 = vmatprep.mubr.f32.mxu0 0.0
    %325 = vmatmul.mubr.f32.gmra.mrb[0].mxu0 %v201
    %v326 = vpop.f32.mrb[0].mxu0
    %v327 = vadd.f32 0.0, %v326
    %v328 = vpop.f32.mrb[0].mxu0
    %329 = vmatprep.mubr.f32.mxu0 0.0
    %330 = vmatmul.mubr.f32.gmra.mrb[0].mxu0 %v204
    %v331 = vpop.f32.mrb[0].mxu0
    %v332 = vadd.f32 0.0, %v331
    %v333 = vpop.f32.mrb[0].mxu0
    %334 = vmatprep.mubr.f32.mxu0 0.0
    %335 = vmatmul.mubr.f32.gmra.mrb[0].mxu0 %v207
    %v336 = vpop.f32.mrb[0].mxu0
    %v337 = vadd.f32 0.0, %v336
    %v338 = vpop.f32.mrb[0].mxu0
    %339 = vmatprep.mubr.f32.mxu0 0.0
    %340 = vmatmul.mubr.f32.gmra.mrb[0].mxu0 %v210
    %v341 = vpop.f32.mrb[0].mxu0
    %v342 = vadd.f32 0.0, %v341
    %v343 = vpop.f32.mrb[0].mxu0
    %344 = vmatprep.mubr.f32.mxu0 0.0
    %345 = vmatmul.mubr.f32.gmra.mrb[0].mxu0 %v213
    %v346 = vpop.f32.mrb[0].mxu0
    %v347 = vadd.f32 0.0, %v346
    %v348 = vpop.f32.mrb[0].mxu0
    %349 = vmatprep.mubr.f32.mxu0 0.0
    %350 = vmatmul.mubr.f32.gmra.mrb[0].mxu0 %v216
    %v351 = vpop.f32.mrb[0].mxu0
    %v352 = vadd.f32 0.0, %v351
    %v353 = vpop.f32.mrb[0].mxu0
    %354 = vmatprep.mubr.f32.mxu0 0.0
    %355 = vmatmul.mubr.f32.gmra.mrb[0].mxu0 %v219
    %v356 = vpop.f32.mrb[0].mxu0
    %v357 = vadd.f32 0.0, %v356
    %v358 = vpop.f32.mrb[0].mxu0
    %359 = vmatprep.mubr.f32.mxu0 0.0
    %360 = vmatmul.mubr.f32.gmra.mrb[0].mxu0 %v222
    %v361 = vpop.f32.mrb[0].mxu0
    %v362 = vadd.f32 0.0, %v361
    %v363 = vpop.f32.mrb[0].mxu0
    %364 = vmatprep.mubr.f32.mxu0 0.0
    %365 = vmatmul.mubr.f32.gmra.mrb[0].mxu0 %v225
    %v366 = vpop.f32.mrb[0].mxu0
    %v367 = vadd.f32 0.0, %v366
    %v368 = vpop.f32.mrb[0].mxu0
    %369 = vmatprep.mubr.f32.mxu0 0.0
    %370 = vmatmul.mubr.f32.gmra.mrb[0].mxu0 %v228
    %v371 = vpop.f32.mrb[0].mxu0
    %v372 = vadd.f32 0.0, %v371
    %v373 = vpop.f32.mrb[0].mxu0
    %374 = vdwg.mxu0
    %375 = vmatprep.subr.mxu0 0.0
    %376 = vmatpush1.msra.mxu0 %v297
    %377 = vmatprep.subr.mxu0 0.0
    %378 = vmatpush1.msra.mxu0 %v302
    %379 = vmatprep.subr.mxu0 0.0
    %380 = vmatpush1.msra.mxu0 %v307
    %381 = vmatprep.subr.mxu0 0.0
    %382 = vmatpush1.msra.mxu0 %v312
    %383 = vmatprep.subr.mxu0 0.0
    %384 = vmatpush1.msra.mxu0 %v317
    %385 = vmatprep.subr.mxu0 0.0
    %386 = vmatpush1.msra.mxu0 %v322
    %387 = vmatprep.subr.mxu0 0.0
    %388 = vmatpush1.msra.mxu0 %v327
    %389 = vmatprep.subr.mxu0 0.0
    %390 = vmatpush1.msra.mxu0 %v332
    %391 = vmatprep.subr.mxu0 0.0
    %392 = vmatpush1.msra.mxu0 %v337
    %393 = vmatprep.subr.mxu0 0.0
    %394 = vmatpush1.msra.mxu0 %v342
    %395 = vmatprep.subr.mxu0 0.0
    %396 = vmatpush1.msra.mxu0 %v347
    %397 = vmatprep.subr.mxu0 0.0
    %398 = vmatpush1.msra.mxu0 %v352
    %399 = vmatprep.subr.mxu0 0.0
    %400 = vmatpush1.msra.mxu0 %v357
    %401 = vmatprep.subr.mxu0 0.0
    %402 = vmatpush1.msra.mxu0 %v362
    %403 = vmatprep.subr.mxu0 0.0
    %404 = vmatpush1.msra.mxu0 %v367
    %405 = vmatprep.subr.mxu0 0.0
    %406 = vmatpush1.msra.mxu0 %v372
    %407 = vmatprep.subr.mxu0 0.0
    %408 = vmatpush1.msra.mxu0 0.0
    %409 = vmatprep.subr.mxu0 0.0
    %410 = vmatpush1.msra.mxu0 0.0
    %411 = vmatprep.subr.mxu0 0.0
    %412 = vmatpush1.msra.mxu0 0.0
    %413 = vmatprep.subr.mxu0 0.0
    %414 = vmatpush1.msra.mxu0 0.0
    %415 = vmatprep.subr.mxu0 0.0
    %416 = vmatpush1.msra.mxu0 0.0
    %417 = vmatprep.subr.mxu0 0.0
    %418 = vmatpush1.msra.mxu0 0.0
    %419 = vmatprep.subr.mxu0 0.0
    %420 = vmatpush1.msra.mxu0 0.0
    %421 = vmatprep.subr.mxu0 0.0
    %422 = vmatpush1.msra.mxu0 0.0
    %423 = vmatprep.subr.mxu0 0.0
    %424 = vmatpush1.msra.mxu0 0.0
    %425 = vmatprep.subr.mxu0 0.0
    %426 = vmatpush1.msra.mxu0 0.0
    %427 = vmatprep.subr.mxu0 0.0
    %428 = vmatpush1.msra.mxu0 0.0
    %429 = vmatprep.subr.mxu0 0.0
    %430 = vmatpush1.msra.mxu0 0.0
    %431 = vmatprep.subr.mxu0 0.0
    %432 = vmatpush1.msra.mxu0 0.0
    %433 = vmatprep.subr.mxu0 0.0
    %434 = vmatpush1.msra.mxu0 0.0
    %435 = vmatprep.subr.mxu0 0.0
    %436 = vmatpush1.msra.mxu0 0.0
    %437 = vmatprep.subr.mxu0 0.0
    %438 = vmatpush1.msra.mxu0 0.0
    %439 = vmatprep.mubr.f32.mxu0 0.0
    %440 = vmatmul.mubr.f32.gmra.mrb[0].mxu0 %v160
    %v441 = vpop.f32.mrb[0].mxu0
    %v442 = vadd.f32 0.0, %v441
    %v443 = vpop.f32.mrb[0].mxu0
    %444 = vmatprep.mubr.f32.mxu0 0.0
    %445 = vmatmul.mubr.f32.gmra.mrb[0].mxu0 %v161
    %v446 = vpop.f32.mrb[0].mxu0
    %v447 = vadd.f32 0.0, %v446
    %v448 = vpop.f32.mrb[0].mxu0
    %449 = vmatprep.mubr.f32.mxu0 0.0
    %450 = vmatmul.mubr.f32.gmra.mrb[0].mxu0 %v162
    %v451 = vpop.f32.mrb[0].mxu0
    %v452 = vadd.f32 0.0, %v451
    %v453 = vpop.f32.mrb[0].mxu0
    %454 = vmatprep.mubr.f32.mxu0 0.0
    %455 = vmatmul.mubr.f32.gmra.mrb[0].mxu0 %v163
    %v456 = vpop.f32.mrb[0].mxu0
    %v457 = vadd.f32 0.0, %v456
    %v458 = vpop.f32.mrb[0].mxu0
    %459 = vmatprep.mubr.f32.mxu0 0.0
    %460 = vmatmul.mubr.f32.gmra.mrb[0].mxu0 %v164
    %v461 = vpop.f32.mrb[0].mxu0
    %v462 = vadd.f32 0.0, %v461
    %v463 = vpop.f32.mrb[0].mxu0
    %464 = vmatprep.mubr.f32.mxu0 0.0
    %465 = vmatmul.mubr.f32.gmra.mrb[0].mxu0 %v165
    %v466 = vpop.f32.mrb[0].mxu0
    %v467 = vadd.f32 0.0, %v466
    %v468 = vpop.f32.mrb[0].mxu0
    %469 = vmatprep.mubr.f32.mxu0 0.0
    %470 = vmatmul.mubr.f32.gmra.mrb[0].mxu0 %v166
    %v471 = vpop.f32.mrb[0].mxu0
    %v472 = vadd.f32 0.0, %v471
    %v473 = vpop.f32.mrb[0].mxu0
    %474 = vmatprep.mubr.f32.mxu0 0.0
    %475 = vmatmul.mubr.f32.gmra.mrb[0].mxu0 %v167
    %v476 = vpop.f32.mrb[0].mxu0
    %v477 = vadd.f32 0.0, %v476
    %v478 = vpop.f32.mrb[0].mxu0
    %479 = vmatprep.mubr.f32.mxu0 0.0
    %480 = vmatmul.mubr.f32.gmra.mrb[0].mxu0 %v168
    %v481 = vpop.f32.mrb[0].mxu0
    %v482 = vadd.f32 0.0, %v481
    %v483 = vpop.f32.mrb[0].mxu0
    %484 = vmatprep.mubr.f32.mxu0 0.0
    %485 = vmatmul.mubr.f32.gmra.mrb[0].mxu0 %v169
    %v486 = vpop.f32.mrb[0].mxu0
    %v487 = vadd.f32 0.0, %v486
    %v488 = vpop.f32.mrb[0].mxu0
    %489 = vmatprep.mubr.f32.mxu0 0.0
    %490 = vmatmul.mubr.f32.gmra.mrb[0].mxu0 %v170
    %v491 = vpop.f32.mrb[0].mxu0
    %v492 = vadd.f32 0.0, %v491
    %v493 = vpop.f32.mrb[0].mxu0
    %494 = vmatprep.mubr.f32.mxu0 0.0
    %495 = vmatmul.mubr.f32.gmra.mrb[0].mxu0 %v171
    %v496 = vpop.f32.mrb[0].mxu0
    %v497 = vadd.f32 0.0, %v496
    %v498 = vpop.f32.mrb[0].mxu0
    %499 = vmatprep.mubr.f32.mxu0 0.0
    %500 = vmatmul.mubr.f32.gmra.mrb[0].mxu0 %v172
    %v501 = vpop.f32.mrb[0].mxu0
    %v502 = vadd.f32 0.0, %v501
    %v503 = vpop.f32.mrb[0].mxu0
    %504 = vmatprep.mubr.f32.mxu0 0.0
    %505 = vmatmul.mubr.f32.gmra.mrb[0].mxu0 %v173
    %v506 = vpop.f32.mrb[0].mxu0
    %v507 = vadd.f32 0.0, %v506
    %v508 = vpop.f32.mrb[0].mxu0
    %509 = vmatprep.mubr.f32.mxu0 0.0
    %510 = vmatmul.mubr.f32.gmra.mrb[0].mxu0 %v174
    %v511 = vpop.f32.mrb[0].mxu0
    %v512 = vadd.f32 0.0, %v511
    %v513 = vpop.f32.mrb[0].mxu0
    %514 = vmatprep.mubr.f32.mxu0 0.0
    %515 = vmatmul.mubr.f32.gmra.mrb[0].mxu0 %v175
    %v516 = vpop.f32.mrb[0].mxu0
    %v517 = vadd.f32 0.0, %v516
    %v518 = vpop.f32.mrb[0].mxu0
    %519 = vdwg.mxu0
    %536 = vrot.lane.b32.xlu0 %v442, 32
    %v537 = vpop.permute.xlu0 %536
    %538 = vrot.lane.b32.xlu0 %v447, 32
    %v539 = vpop.permute.xlu0 %538
    %540 = vrot.lane.b32.xlu0 %v452, 32
    %v541 = vpop.permute.xlu0 %540
    %542 = vrot.lane.b32.xlu0 %v457, 32
    %v543 = vpop.permute.xlu0 %542
    %544 = vrot.lane.b32.xlu0 %v462, 32
    %v545 = vpop.permute.xlu0 %544
    %546 = vrot.lane.b32.xlu0 %v467, 32
    %v547 = vpop.permute.xlu0 %546
    %548 = vrot.lane.b32.xlu0 %v472, 32
    %v549 = vpop.permute.xlu0 %548
    %550 = vrot.lane.b32.xlu0 %v477, 32
    %v551 = vpop.permute.xlu0 %550
    %552 = vrot.lane.b32.xlu0 %v482, 32
    %v553 = vpop.permute.xlu0 %552
    %554 = vrot.lane.b32.xlu0 %v487, 32
    %v555 = vpop.permute.xlu0 %554
    %556 = vrot.lane.b32.xlu0 %v492, 32
    %v557 = vpop.permute.xlu0 %556
    %558 = vrot.lane.b32.xlu0 %v497, 32
    %v559 = vpop.permute.xlu0 %558
    %560 = vrot.lane.b32.xlu0 %v502, 32
    %v561 = vpop.permute.xlu0 %560
    %562 = vrot.lane.b32.xlu0 %v507, 32
    %v563 = vpop.permute.xlu0 %562
    %564 = vrot.lane.b32.xlu0 %v512, 32
    %v565 = vpop.permute.xlu0 %564
    %566 = vrot.lane.b32.xlu0 %v517, 32
    %v567 = vpop.permute.xlu0 %566
    %v584 = vsel %vm181, %v297, %v537
    %v585 = vsel %vm181, %v302, %v539
    %v586 = vsel %vm181, %v307, %v541
    %v587 = vsel %vm181, %v312, %v543
    %v588 = vsel %vm181, %v317, %v545
    %v589 = vsel %vm181, %v322, %v547
    %v590 = vsel %vm181, %v327, %v549
    %v591 = vsel %vm181, %v332, %v551
    %v592 = vsel %vm181, %v337, %v553
    %v593 = vsel %vm181, %v342, %v555
    %v594 = vsel %vm181, %v347, %v557
    %v595 = vsel %vm181, %v352, %v559
    %v596 = vsel %vm181, %v357, %v561
    %v597 = vsel %vm181, %v362, %v563
    %v598 = vsel %vm181, %v367, %v565
    %v599 = vsel %vm181, %v372, %v567
    %v601 = vlaneseq
    %v602 = vshrl.u32 %v601, 7
    %v603 = vsub.s32 0, %v602
    %v604 = vrot.slane %v180, %v603
    %606 = vmatprep.subr.mxu0 0.0
    %607 = vmatpush1.msra.mxu0 %v584
    %608 = vmatprep.subr.mxu0 0.0
    %609 = vmatpush1.msra.mxu0 %v585
    %610 = vmatprep.subr.mxu0 0.0
    %611 = vmatpush1.msra.mxu0 %v586
    %612 = vmatprep.subr.mxu0 0.0
    %613 = vmatpush1.msra.mxu0 %v587
    %614 = vmatprep.subr.mxu0 0.0
    %615 = vmatpush1.msra.mxu0 %v588
    %616 = vmatprep.subr.mxu0 0.0
    %617 = vmatpush1.msra.mxu0 %v589
    %618 = vmatprep.subr.mxu0 0.0
    %619 = vmatpush1.msra.mxu0 %v590
    %620 = vmatprep.subr.mxu0 0.0
    %621 = vmatpush1.msra.mxu0 %v591
    %622 = vmatprep.subr.mxu0 0.0
    %623 = vmatpush1.msra.mxu0 %v592
    %624 = vmatprep.subr.mxu0 0.0
    %625 = vmatpush1.msra.mxu0 %v593
    %626 = vmatprep.subr.mxu0 0.0
    %627 = vmatpush1.msra.mxu0 %v594
    %628 = vmatprep.subr.mxu0 0.0
    %629 = vmatpush1.msra.mxu0 %v595
    %630 = vmatprep.subr.mxu0 0.0
    %631 = vmatpush1.msra.mxu0 %v596
    %632 = vmatprep.subr.mxu0 0.0
    %633 = vmatpush1.msra.mxu0 %v597
    %634 = vmatprep.subr.mxu0 0.0
    %635 = vmatpush1.msra.mxu0 %v598
    %636 = vmatprep.subr.mxu0 0.0
    %637 = vmatpush1.msra.mxu0 %v599
    %638 = vmatprep.subr.mxu0 0.0
    %639 = vmatpush1.msra.mxu0 0.0
    %640 = vmatprep.subr.mxu0 0.0
    %641 = vmatpush1.msra.mxu0 0.0
    %642 = vmatprep.subr.mxu0 0.0
    %643 = vmatpush1.msra.mxu0 0.0
    %644 = vmatprep.subr.mxu0 0.0
    %645 = vmatpush1.msra.mxu0 0.0
    %646 = vmatprep.subr.mxu0 0.0
    %647 = vmatpush1.msra.mxu0 0.0
    %648 = vmatprep.subr.mxu0 0.0
    %649 = vmatpush1.msra.mxu0 0.0
    %650 = vmatprep.subr.mxu0 0.0
    %651 = vmatpush1.msra.mxu0 0.0
    %652 = vmatprep.subr.mxu0 0.0
    %653 = vmatpush1.msra.mxu0 0.0
    %654 = vmatprep.subr.mxu0 0.0
    %655 = vmatpush1.msra.mxu0 0.0
    %656 = vmatprep.subr.mxu0 0.0
    %657 = vmatpush1.msra.mxu0 0.0
    %658 = vmatprep.subr.mxu0 0.0
    %659 = vmatpush1.msra.mxu0 0.0
    %660 = vmatprep.subr.mxu0 0.0
    %661 = vmatpush1.msra.mxu0 0.0
    %662 = vmatprep.subr.mxu0 0.0
    %663 = vmatpush1.msra.mxu0 0.0
    %664 = vmatprep.subr.mxu0 0.0
    %665 = vmatpush1.msra.mxu0 0.0
    %666 = vmatprep.subr.mxu0 0.0
    %667 = vmatpush1.msra.mxu0 0.0
    %668 = vmatprep.subr.mxu0 0.0
    %669 = vmatpush1.msra.mxu0 0.0
    %670 = vmatprep.mubr.f32.mxu0 0.0
    %671 = vmatmul.mubr.f32.gmra.mrb[0].mxu0 %v30
    %v672 = vpop.f32.mrb[0].mxu0
    %v673 = vadd.f32 %v604, %v672
    %v674 = vpop.f32.mrb[0].mxu0
    %675 = vmatprep.mubr.f32.mxu0 0.0
    %676 = vmatmul.mubr.f32.gmra.mrb[0].mxu0 %v31
    %v677 = vpop.f32.mrb[0].mxu0
    %v678 = vadd.f32 %v604, %v677
    %v679 = vpop.f32.mrb[0].mxu0
    %680 = vmatprep.mubr.f32.mxu0 0.0
    %681 = vmatmul.mubr.f32.gmra.mrb[0].mxu0 %v32
    %v682 = vpop.f32.mrb[0].mxu0
    %v683 = vadd.f32 %v604, %v682
    %v684 = vpop.f32.mrb[0].mxu0
    %685 = vmatprep.mubr.f32.mxu0 0.0
    %686 = vmatmul.mubr.f32.gmra.mrb[0].mxu0 %v33
    %v687 = vpop.f32.mrb[0].mxu0
    %v688 = vadd.f32 %v604, %v687
    %v689 = vpop.f32.mrb[0].mxu0
    %690 = vmatprep.mubr.f32.mxu0 0.0
    %691 = vmatmul.mubr.f32.gmra.mrb[0].mxu0 %v34
    %v692 = vpop.f32.mrb[0].mxu0
    %v693 = vadd.f32 %v604, %v692
    %v694 = vpop.f32.mrb[0].mxu0
    %695 = vmatprep.mubr.f32.mxu0 0.0
    %696 = vmatmul.mubr.f32.gmra.mrb[0].mxu0 %v35
    %v697 = vpop.f32.mrb[0].mxu0
    %v698 = vadd.f32 %v604, %v697
    %v699 = vpop.f32.mrb[0].mxu0
    %700 = vmatprep.mubr.f32.mxu0 0.0
    %701 = vmatmul.mubr.f32.gmra.mrb[0].mxu0 %v36
    %v702 = vpop.f32.mrb[0].mxu0
    %v703 = vadd.f32 %v604, %v702
    %v704 = vpop.f32.mrb[0].mxu0
    %705 = vmatprep.mubr.f32.mxu0 0.0
    %706 = vmatmul.mubr.f32.gmra.mrb[0].mxu0 %v37
    %v707 = vpop.f32.mrb[0].mxu0
    %v708 = vadd.f32 %v604, %v707
    %v709 = vpop.f32.mrb[0].mxu0
    %710 = vmatprep.mubr.f32.mxu0 0.0
    %711 = vmatmul.mubr.f32.gmra.mrb[0].mxu0 %v38
    %v712 = vpop.f32.mrb[0].mxu0
    %v713 = vadd.f32 %v604, %v712
    %v714 = vpop.f32.mrb[0].mxu0
    %715 = vmatprep.mubr.f32.mxu0 0.0
    %716 = vmatmul.mubr.f32.gmra.mrb[0].mxu0 %v39
    %v717 = vpop.f32.mrb[0].mxu0
    %v718 = vadd.f32 %v604, %v717
    %v719 = vpop.f32.mrb[0].mxu0
    %720 = vmatprep.mubr.f32.mxu0 0.0
    %721 = vmatmul.mubr.f32.gmra.mrb[0].mxu0 %v40
    %v722 = vpop.f32.mrb[0].mxu0
    %v723 = vadd.f32 %v604, %v722
    %v724 = vpop.f32.mrb[0].mxu0
    %725 = vmatprep.mubr.f32.mxu0 0.0
    %726 = vmatmul.mubr.f32.gmra.mrb[0].mxu0 %v41
    %v727 = vpop.f32.mrb[0].mxu0
    %v728 = vadd.f32 %v604, %v727
    %v729 = vpop.f32.mrb[0].mxu0
    %730 = vmatprep.mubr.f32.mxu0 0.0
    %731 = vmatmul.mubr.f32.gmra.mrb[0].mxu0 %v42
    %v732 = vpop.f32.mrb[0].mxu0
    %v733 = vadd.f32 %v604, %v732
    %v734 = vpop.f32.mrb[0].mxu0
    %735 = vmatprep.mubr.f32.mxu0 0.0
    %736 = vmatmul.mubr.f32.gmra.mrb[0].mxu0 %v43
    %v737 = vpop.f32.mrb[0].mxu0
    %v738 = vadd.f32 %v604, %v737
    %v739 = vpop.f32.mrb[0].mxu0
    %740 = vmatprep.mubr.f32.mxu0 0.0
    %741 = vmatmul.mubr.f32.gmra.mrb[0].mxu0 %v44
    %v742 = vpop.f32.mrb[0].mxu0
    %v743 = vadd.f32 %v604, %v742
    %v744 = vpop.f32.mrb[0].mxu0
    %745 = vmatprep.mubr.f32.mxu0 0.0
    %746 = vmatmul.mubr.f32.gmra.mrb[0].mxu0 %v45
    %v747 = vpop.f32.mrb[0].mxu0
    %v748 = vadd.f32 %v604, %v747
    %v749 = vpop.f32.mrb[0].mxu0
    %750 = vdwg.mxu0
    %v751 = vmax.f32 %v673, 0.0
    %v752 = vmax.f32 %v678, 0.0
    %v753 = vmax.f32 %v683, 0.0
    %v754 = vmax.f32 %v688, 0.0
    %v755 = vmax.f32 %v693, 0.0
    %v756 = vmax.f32 %v698, 0.0
    %v757 = vmax.f32 %v703, 0.0
    %v758 = vmax.f32 %v708, 0.0
    %v759 = vmax.f32 %v713, 0.0
    %v760 = vmax.f32 %v718, 0.0
    %v761 = vmax.f32 %v723, 0.0
    %v762 = vmax.f32 %v728, 0.0
    %v763 = vmax.f32 %v733, 0.0
    %v764 = vmax.f32 %v738, 0.0
    %v765 = vmax.f32 %v743, 0.0
    %v766 = vmax.f32 %v748, 0.0
    %v767 = vld [vmem:[%s5] sm:$0xff]
    %v768 = vld [vmem:[%s5 + $0x8] sm:$0xff]
    %v769 = vld [vmem:[%s5 + $0x10] sm:$0xff]
    %v770 = vld [vmem:[%s5 + $0x18] sm:$0xff]
    %v771 = vld [vmem:[%s6] sm:$0x1]
    %v773 = vsel %vm181, %v751, 0
    %v776 = vsel %vm181, %v752, 0
    %v779 = vsel %vm181, %v753, 0
    %v782 = vsel %vm181, %v754, 0
    %v785 = vsel %vm181, %v755, 0
    %v788 = vsel %vm181, %v756, 0
    %v791 = vsel %vm181, %v757, 0
    %v794 = vsel %vm181, %v758, 0
    %v797 = vsel %vm181, %v759, 0
    %v800 = vsel %vm181, %v760, 0
    %v803 = vsel %vm181, %v761, 0
    %v806 = vsel %vm181, %v762, 0
    %v809 = vsel %vm181, %v763, 0
    %v812 = vsel %vm181, %v764, 0
    %v815 = vsel %vm181, %v765, 0
    %v818 = vsel %vm181, %v766, 0
    %820 = vmatprep.subr.mxu0 0.0
    %821 = vmatpush1.msra.mxu0 %v767
    %822 = vmatprep.subr.mxu0 0.0
    %823 = vmatpush1.msra.mxu0 %v768
    %824 = vmatprep.subr.mxu0 0.0
    %825 = vmatpush1.msra.mxu0 %v769
    %826 = vmatprep.subr.mxu0 0.0
    %827 = vmatpush1.msra.mxu0 %v770
    %828 = vmatprep.subr.mxu0 0.0
    %829 = vmatpush1.msra.mxu0 0.0
    %830 = vmatprep.subr.mxu0 0.0
    %831 = vmatpush1.msra.mxu0 0.0
    %832 = vmatprep.subr.mxu0 0.0
    %833 = vmatpush1.msra.mxu0 0.0
    %834 = vmatprep.subr.mxu0 0.0
    %835 = vmatpush1.msra.mxu0 0.0
    %836 = vmatprep.subr.mxu0 0.0
    %837 = vmatpush1.msra.mxu0 0.0
    %838 = vmatprep.subr.mxu0 0.0
    %839 = vmatpush1.msra.mxu0 0.0
    %840 = vmatprep.subr.mxu0 0.0
    %841 = vmatpush1.msra.mxu0 0.0
    %842 = vmatprep.subr.mxu0 0.0
    %843 = vmatpush1.msra.mxu0 0.0
    %844 = vmatprep.subr.mxu0 0.0
    %845 = vmatpush1.msra.mxu0 0.0
    %846 = vmatprep.subr.mxu0 0.0
    %847 = vmatpush1.msra.mxu0 0.0
    %848 = vmatprep.subr.mxu0 0.0
    %849 = vmatpush1.msra.mxu0 0.0
    %850 = vmatprep.subr.mxu0 0.0
    %851 = vmatpush1.msra.mxu0 0.0
    %852 = vmatprep.subr.mxu0 0.0
    %853 = vmatpush1.msra.mxu0 0.0
    %854 = vmatprep.subr.mxu0 0.0
    %855 = vmatpush1.msra.mxu0 0.0
    %856 = vmatprep.subr.mxu0 0.0
    %857 = vmatpush1.msra.mxu0 0.0
    %858 = vmatprep.subr.mxu0 0.0
    %859 = vmatpush1.msra.mxu0 0.0
    %860 = vmatprep.subr.mxu0 0.0
    %861 = vmatpush1.msra.mxu0 0.0
    %862 = vmatprep.subr.mxu0 0.0
    %863 = vmatpush1.msra.mxu0 0.0
    %864 = vmatprep.subr.mxu0 0.0
    %865 = vmatpush1.msra.mxu0 0.0
    %866 = vmatprep.subr.mxu0 0.0
    %867 = vmatpush1.msra.mxu0 0.0
    %868 = vmatprep.subr.mxu0 0.0
    %869 = vmatpush1.msra.mxu0 0.0
    %870 = vmatprep.subr.mxu0 0.0
    %871 = vmatpush1.msra.mxu0 0.0
    %872 = vmatprep.subr.mxu0 0.0
    %873 = vmatpush1.msra.mxu0 0.0
    %874 = vmatprep.subr.mxu0 0.0
    %875 = vmatpush1.msra.mxu0 0.0
    %876 = vmatprep.subr.mxu0 0.0
    %877 = vmatpush1.msra.mxu0 0.0
    %878 = vmatprep.subr.mxu0 0.0
    %879 = vmatpush1.msra.mxu0 0.0
    %880 = vmatprep.subr.mxu0 0.0
    %881 = vmatpush1.msra.mxu0 0.0
    %882 = vmatprep.subr.mxu0 0.0
    %883 = vmatpush1.msra.mxu0 0.0
    %884 = vmatprep.mubr.f32.mxu0 0.0
    %885 = vmatmul.mubr.f32.gmra.mrb[0].mxu0 %v773
    %v886 = vpop.f32.mrb[0].mxu0
    %v887 = vadd.f32 0.0, %v886
    %v888 = vpop.f32.mrb[0].mxu0
    %889 = vmatprep.mubr.f32.mxu0 0.0
    %890 = vmatmul.mubr.f32.gmra.mrb[0].mxu0 %v776
    %v891 = vpop.f32.mrb[0].mxu0
    %v892 = vadd.f32 0.0, %v891
    %v893 = vpop.f32.mrb[0].mxu0
    %894 = vmatprep.mubr.f32.mxu0 0.0
    %895 = vmatmul.mubr.f32.gmra.mrb[0].mxu0 %v779
    %v896 = vpop.f32.mrb[0].mxu0
    %v897 = vadd.f32 0.0, %v896
    %v898 = vpop.f32.mrb[0].mxu0
    %899 = vmatprep.mubr.f32.mxu0 0.0
    %900 = vmatmul.mubr.f32.gmra.mrb[0].mxu0 %v782
    %v901 = vpop.f32.mrb[0].mxu0
    %v902 = vadd.f32 0.0, %v901
    %v903 = vpop.f32.mrb[0].mxu0
    %904 = vmatprep.mubr.f32.mxu0 0.0
    %905 = vmatmul.mubr.f32.gmra.mrb[0].mxu0 %v785
    %v906 = vpop.f32.mrb[0].mxu0
    %v907 = vadd.f32 0.0, %v906
    %v908 = vpop.f32.mrb[0].mxu0
    %909 = vmatprep.mubr.f32.mxu0 0.0
    %910 = vmatmul.mubr.f32.gmra.mrb[0].mxu0 %v788
    %v911 = vpop.f32.mrb[0].mxu0
    %v912 = vadd.f32 0.0, %v911
    %v913 = vpop.f32.mrb[0].mxu0
    %914 = vmatprep.mubr.f32.mxu0 0.0
    %915 = vmatmul.mubr.f32.gmra.mrb[0].mxu0 %v791
    %v916 = vpop.f32.mrb[0].mxu0
    %v917 = vadd.f32 0.0, %v916
    %v918 = vpop.f32.mrb[0].mxu0
    %919 = vmatprep.mubr.f32.mxu0 0.0
    %920 = vmatmul.mubr.f32.gmra.mrb[0].mxu0 %v794
    %v921 = vpop.f32.mrb[0].mxu0
    %v922 = vadd.f32 0.0, %v921
    %v923 = vpop.f32.mrb[0].mxu0
    %924 = vmatprep.mubr.f32.mxu0 0.0
    %925 = vmatmul.mubr.f32.gmra.mrb[0].mxu0 %v797
    %v926 = vpop.f32.mrb[0].mxu0
    %v927 = vadd.f32 0.0, %v926
    %v928 = vpop.f32.mrb[0].mxu0
    %929 = vmatprep.mubr.f32.mxu0 0.0
    %930 = vmatmul.mubr.f32.gmra.mrb[0].mxu0 %v800
    %v931 = vpop.f32.mrb[0].mxu0
    %v932 = vadd.f32 0.0, %v931
    %v933 = vpop.f32.mrb[0].mxu0
    %934 = vmatprep.mubr.f32.mxu0 0.0
    %935 = vmatmul.mubr.f32.gmra.mrb[0].mxu0 %v803
    %v936 = vpop.f32.mrb[0].mxu0
    %v937 = vadd.f32 0.0, %v936
    %v938 = vpop.f32.mrb[0].mxu0
    %939 = vmatprep.mubr.f32.mxu0 0.0
    %940 = vmatmul.mubr.f32.gmra.mrb[0].mxu0 %v806
    %v941 = vpop.f32.mrb[0].mxu0
    %v942 = vadd.f32 0.0, %v941
    %v943 = vpop.f32.mrb[0].mxu0
    %944 = vmatprep.mubr.f32.mxu0 0.0
    %945 = vmatmul.mubr.f32.gmra.mrb[0].mxu0 %v809
    %v946 = vpop.f32.mrb[0].mxu0
    %v947 = vadd.f32 0.0, %v946
    %v948 = vpop.f32.mrb[0].mxu0
    %949 = vmatprep.mubr.f32.mxu0 0.0
    %950 = vmatmul.mubr.f32.gmra.mrb[0].mxu0 %v812
    %v951 = vpop.f32.mrb[0].mxu0
    %v952 = vadd.f32 0.0, %v951
    %v953 = vpop.f32.mrb[0].mxu0
    %954 = vmatprep.mubr.f32.mxu0 0.0
    %955 = vmatmul.mubr.f32.gmra.mrb[0].mxu0 %v815
    %v956 = vpop.f32.mrb[0].mxu0
    %v957 = vadd.f32 0.0, %v956
    %v958 = vpop.f32.mrb[0].mxu0
    %959 = vmatprep.mubr.f32.mxu0 0.0
    %960 = vmatmul.mubr.f32.gmra.mrb[0].mxu0 %v818
    %v961 = vpop.f32.mrb[0].mxu0
    %v962 = vadd.f32 0.0, %v961
    %v963 = vpop.f32.mrb[0].mxu0
    %964 = vdwg.mxu0
    %965 = vrot.lane.b32.xlu0 %v751, 96
    %v966 = vpop.permute.xlu0 %965
    %967 = vrot.lane.b32.xlu0 %v752, 96
    %v968 = vpop.permute.xlu0 %967
    %969 = vrot.lane.b32.xlu0 %v753, 96
    %v970 = vpop.permute.xlu0 %969
    %971 = vrot.lane.b32.xlu0 %v754, 96
    %v972 = vpop.permute.xlu0 %971
    %973 = vrot.lane.b32.xlu0 %v755, 96
    %v974 = vpop.permute.xlu0 %973
    %975 = vrot.lane.b32.xlu0 %v756, 96
    %v976 = vpop.permute.xlu0 %975
    %977 = vrot.lane.b32.xlu0 %v757, 96
    %v978 = vpop.permute.xlu0 %977
    %979 = vrot.lane.b32.xlu0 %v758, 96
    %v980 = vpop.permute.xlu0 %979
    %981 = vrot.lane.b32.xlu0 %v759, 96
    %v982 = vpop.permute.xlu0 %981
    %983 = vrot.lane.b32.xlu0 %v760, 96
    %v984 = vpop.permute.xlu0 %983
    %985 = vrot.lane.b32.xlu0 %v761, 96
    %v986 = vpop.permute.xlu0 %985
    %987 = vrot.lane.b32.xlu0 %v762, 96
    %v988 = vpop.permute.xlu0 %987
    %989 = vrot.lane.b32.xlu0 %v763, 96
    %v990 = vpop.permute.xlu0 %989
    %991 = vrot.lane.b32.xlu0 %v764, 96
    %v992 = vpop.permute.xlu0 %991
    %993 = vrot.lane.b32.xlu0 %v765, 96
    %v994 = vpop.permute.xlu0 %993
    %995 = vrot.lane.b32.xlu0 %v766, 96
    %v996 = vpop.permute.xlu0 %995
    %v997 = vsel %vm181, %v966, 0
    %v999 = vsel %vm181, %v968, 0
    %v1001 = vsel %vm181, %v970, 0
    %v1003 = vsel %vm181, %v972, 0
    %v1005 = vsel %vm181, %v974, 0
    %v1007 = vsel %vm181, %v976, 0
    %v1009 = vsel %vm181, %v978, 0
    %v1011 = vsel %vm181, %v980, 0
    %v1013 = vsel %vm181, %v982, 0
    %v1015 = vsel %vm181, %v984, 0
    %v1017 = vsel %vm181, %v986, 0
    %v1019 = vsel %vm181, %v988, 0
    %v1021 = vsel %vm181, %v990, 0
    %v1023 = vsel %vm181, %v992, 0
    %v1025 = vsel %vm181, %v994, 0
    %v1027 = vsel %vm181, %v996, 0
    %1029 = vmatprep.subr.mxu0 0.0
    %1030 = vmatpush1.msra.mxu0 %v767
    %1031 = vmatprep.subr.mxu0 0.0
    %1032 = vmatpush1.msra.mxu0 %v768
    %1033 = vmatprep.subr.mxu0 0.0
    %1034 = vmatpush1.msra.mxu0 %v769
    %1035 = vmatprep.subr.mxu0 0.0
    %1036 = vmatpush1.msra.mxu0 %v770
    %1037 = vmatprep.subr.mxu0 0.0
    %1038 = vmatpush1.msra.mxu0 0.0
    %1039 = vmatprep.subr.mxu0 0.0
    %1040 = vmatpush1.msra.mxu0 0.0
    %1041 = vmatprep.subr.mxu0 0.0
    %1042 = vmatpush1.msra.mxu0 0.0
    %1043 = vmatprep.subr.mxu0 0.0
    %1044 = vmatpush1.msra.mxu0 0.0
    %1045 = vmatprep.subr.mxu0 0.0
    %1046 = vmatpush1.msra.mxu0 0.0
    %1047 = vmatprep.subr.mxu0 0.0
    %1048 = vmatpush1.msra.mxu0 0.0
    %1049 = vmatprep.subr.mxu0 0.0
    %1050 = vmatpush1.msra.mxu0 0.0
    %1051 = vmatprep.subr.mxu0 0.0
    %1052 = vmatpush1.msra.mxu0 0.0
    %1053 = vmatprep.subr.mxu0 0.0
    %1054 = vmatpush1.msra.mxu0 0.0
    %1055 = vmatprep.subr.mxu0 0.0
    %1056 = vmatpush1.msra.mxu0 0.0
    %1057 = vmatprep.subr.mxu0 0.0
    %1058 = vmatpush1.msra.mxu0 0.0
    %1059 = vmatprep.subr.mxu0 0.0
    %1060 = vmatpush1.msra.mxu0 0.0
    %1061 = vmatprep.subr.mxu0 0.0
    %1062 = vmatpush1.msra.mxu0 0.0
    %1063 = vmatprep.subr.mxu0 0.0
    %1064 = vmatpush1.msra.mxu0 0.0
    %1065 = vmatprep.subr.mxu0 0.0
    %1066 = vmatpush1.msra.mxu0 0.0
    %1067 = vmatprep.subr.mxu0 0.0
    %1068 = vmatpush1.msra.mxu0 0.0
    %1069 = vmatprep.subr.mxu0 0.0
    %1070 = vmatpush1.msra.mxu0 0.0
    %1071 = vmatprep.subr.mxu0 0.0
    %1072 = vmatpush1.msra.mxu0 0.0
    %1073 = vmatprep.subr.mxu0 0.0
    %1074 = vmatpush1.msra.mxu0 0.0
    %1075 = vmatprep.subr.mxu0 0.0
    %1076 = vmatpush1.msra.mxu0 0.0
    %1077 = vmatprep.subr.mxu0 0.0
    %1078 = vmatpush1.msra.mxu0 0.0
    %1079 = vmatprep.subr.mxu0 0.0
    %1080 = vmatpush1.msra.mxu0 0.0
    %1081 = vmatprep.subr.mxu0 0.0
    %1082 = vmatpush1.msra.mxu0 0.0
    %1083 = vmatprep.subr.mxu0 0.0
    %1084 = vmatpush1.msra.mxu0 0.0
    %1085 = vmatprep.subr.mxu0 0.0
    %1086 = vmatpush1.msra.mxu0 0.0
    %1087 = vmatprep.subr.mxu0 0.0
    %1088 = vmatpush1.msra.mxu0 0.0
    %1089 = vmatprep.subr.mxu0 0.0
    %1090 = vmatpush1.msra.mxu0 0.0
    %1091 = vmatprep.subr.mxu0 0.0
    %1092 = vmatpush1.msra.mxu0 0.0
    %1093 = vmatprep.mubr.f32.mxu0 0.0
    %1094 = vmatmul.mubr.f32.gmra.mrb[0].mxu0 %v997
    %v1095 = vpop.f32.mrb[0].mxu0
    %v1096 = vadd.f32 0.0, %v1095
    %v1097 = vpop.f32.mrb[0].mxu0
    %1098 = vmatprep.mubr.f32.mxu0 0.0
    %1099 = vmatmul.mubr.f32.gmra.mrb[0].mxu0 %v999
    %v1100 = vpop.f32.mrb[0].mxu0
    %v1101 = vadd.f32 0.0, %v1100
    %v1102 = vpop.f32.mrb[0].mxu0
    %1103 = vmatprep.mubr.f32.mxu0 0.0
    %1104 = vmatmul.mubr.f32.gmra.mrb[0].mxu0 %v1001
    %v1105 = vpop.f32.mrb[0].mxu0
    %v1106 = vadd.f32 0.0, %v1105
    %v1107 = vpop.f32.mrb[0].mxu0
    %1108 = vmatprep.mubr.f32.mxu0 0.0
    %1109 = vmatmul.mubr.f32.gmra.mrb[0].mxu0 %v1003
    %v1110 = vpop.f32.mrb[0].mxu0
    %v1111 = vadd.f32 0.0, %v1110
    %v1112 = vpop.f32.mrb[0].mxu0
    %1113 = vmatprep.mubr.f32.mxu0 0.0
    %1114 = vmatmul.mubr.f32.gmra.mrb[0].mxu0 %v1005
    %v1115 = vpop.f32.mrb[0].mxu0
    %v1116 = vadd.f32 0.0, %v1115
    %v1117 = vpop.f32.mrb[0].mxu0
    %1118 = vmatprep.mubr.f32.mxu0 0.0
    %1119 = vmatmul.mubr.f32.gmra.mrb[0].mxu0 %v1007
    %v1120 = vpop.f32.mrb[0].mxu0
    %v1121 = vadd.f32 0.0, %v1120
    %v1122 = vpop.f32.mrb[0].mxu0
    %1123 = vmatprep.mubr.f32.mxu0 0.0
    %1124 = vmatmul.mubr.f32.gmra.mrb[0].mxu0 %v1009
    %v1125 = vpop.f32.mrb[0].mxu0
    %v1126 = vadd.f32 0.0, %v1125
    %v1127 = vpop.f32.mrb[0].mxu0
    %1128 = vmatprep.mubr.f32.mxu0 0.0
    %1129 = vmatmul.mubr.f32.gmra.mrb[0].mxu0 %v1011
    %v1130 = vpop.f32.mrb[0].mxu0
    %v1131 = vadd.f32 0.0, %v1130
    %v1132 = vpop.f32.mrb[0].mxu0
    %1133 = vmatprep.mubr.f32.mxu0 0.0
    %1134 = vmatmul.mubr.f32.gmra.mrb[0].mxu0 %v1013
    %v1135 = vpop.f32.mrb[0].mxu0
    %v1136 = vadd.f32 0.0, %v1135
    %v1137 = vpop.f32.mrb[0].mxu0
    %1138 = vmatprep.mubr.f32.mxu0 0.0
    %1139 = vmatmul.mubr.f32.gmra.mrb[0].mxu0 %v1015
    %v1140 = vpop.f32.mrb[0].mxu0
    %v1141 = vadd.f32 0.0, %v1140
    %v1142 = vpop.f32.mrb[0].mxu0
    %1143 = vmatprep.mubr.f32.mxu0 0.0
    %1144 = vmatmul.mubr.f32.gmra.mrb[0].mxu0 %v1017
    %v1145 = vpop.f32.mrb[0].mxu0
    %v1146 = vadd.f32 0.0, %v1145
    %v1147 = vpop.f32.mrb[0].mxu0
    %1148 = vmatprep.mubr.f32.mxu0 0.0
    %1149 = vmatmul.mubr.f32.gmra.mrb[0].mxu0 %v1019
    %v1150 = vpop.f32.mrb[0].mxu0
    %v1151 = vadd.f32 0.0, %v1150
    %v1152 = vpop.f32.mrb[0].mxu0
    %1153 = vmatprep.mubr.f32.mxu0 0.0
    %1154 = vmatmul.mubr.f32.gmra.mrb[0].mxu0 %v1021
    %v1155 = vpop.f32.mrb[0].mxu0
    %v1156 = vadd.f32 0.0, %v1155
    %v1157 = vpop.f32.mrb[0].mxu0
    %1158 = vmatprep.mubr.f32.mxu0 0.0
    %1159 = vmatmul.mubr.f32.gmra.mrb[0].mxu0 %v1023
    %v1160 = vpop.f32.mrb[0].mxu0
    %v1161 = vadd.f32 0.0, %v1160
    %v1162 = vpop.f32.mrb[0].mxu0
    %1163 = vmatprep.mubr.f32.mxu0 0.0
    %1164 = vmatmul.mubr.f32.gmra.mrb[0].mxu0 %v1025
    %v1165 = vpop.f32.mrb[0].mxu0
    %v1166 = vadd.f32 0.0, %v1165
    %v1167 = vpop.f32.mrb[0].mxu0
    %1168 = vmatprep.mubr.f32.mxu0 0.0
    %1169 = vmatmul.mubr.f32.gmra.mrb[0].mxu0 %v1027
    %v1170 = vpop.f32.mrb[0].mxu0
    %v1171 = vadd.f32 0.0, %v1170
    %v1172 = vpop.f32.mrb[0].mxu0
    %1173 = vdwg.mxu0
    %1190 = vrot.lane.b32.xlu0 %v1096, 32
    %v1191 = vpop.permute.xlu0 %1190
    %1192 = vrot.lane.b32.xlu0 %v1101, 32
    %v1193 = vpop.permute.xlu0 %1192
    %1194 = vrot.lane.b32.xlu0 %v1106, 32
    %v1195 = vpop.permute.xlu0 %1194
    %1196 = vrot.lane.b32.xlu0 %v1111, 32
    %v1197 = vpop.permute.xlu0 %1196
    %1198 = vrot.lane.b32.xlu0 %v1116, 32
    %v1199 = vpop.permute.xlu0 %1198
    %1200 = vrot.lane.b32.xlu0 %v1121, 32
    %v1201 = vpop.permute.xlu0 %1200
    %1202 = vrot.lane.b32.xlu0 %v1126, 32
    %v1203 = vpop.permute.xlu0 %1202
    %1204 = vrot.lane.b32.xlu0 %v1131, 32
    %v1205 = vpop.permute.xlu0 %1204
    %1206 = vrot.lane.b32.xlu0 %v1136, 32
    %v1207 = vpop.permute.xlu0 %1206
    %1208 = vrot.lane.b32.xlu0 %v1141, 32
    %v1209 = vpop.permute.xlu0 %1208
    %1210 = vrot.lane.b32.xlu0 %v1146, 32
    %v1211 = vpop.permute.xlu0 %1210
    %1212 = vrot.lane.b32.xlu0 %v1151, 32
    %v1213 = vpop.permute.xlu0 %1212
    %1214 = vrot.lane.b32.xlu0 %v1156, 32
    %v1215 = vpop.permute.xlu0 %1214
    %1216 = vrot.lane.b32.xlu0 %v1161, 32
    %v1217 = vpop.permute.xlu0 %1216
    %1218 = vrot.lane.b32.xlu0 %v1166, 32
    %v1219 = vpop.permute.xlu0 %1218
    %1220 = vrot.lane.b32.xlu0 %v1171, 32
    %v1221 = vpop.permute.xlu0 %1220
    %v1238 = vsel %vm181, %v887, %v1191
    %v1239 = vsel %vm181, %v892, %v1193
    %v1240 = vsel %vm181, %v897, %v1195
    %v1241 = vsel %vm181, %v902, %v1197
    %v1242 = vsel %vm181, %v907, %v1199
    %v1243 = vsel %vm181, %v912, %v1201
    %v1244 = vsel %vm181, %v917, %v1203
    %v1245 = vsel %vm181, %v922, %v1205
    %v1246 = vsel %vm181, %v927, %v1207
    %v1247 = vsel %vm181, %v932, %v1209
    %v1248 = vsel %vm181, %v937, %v1211
    %v1249 = vsel %vm181, %v942, %v1213
    %v1250 = vsel %vm181, %v947, %v1215
    %v1251 = vsel %vm181, %v952, %v1217
    %v1252 = vsel %vm181, %v957, %v1219
    %v1253 = vsel %vm181, %v962, %v1221
    %v1255 = vlaneseq
    %v1256 = vshrl.u32 %v1255, 7
    %v1257 = vsub.s32 0, %v1256
    %v1258 = vrot.slane %v771, %v1257
    %1260 = vmatprep.subr.mxu0 0.0
    %1261 = vmatpush1.msra.mxu0 %v1238
    %1262 = vmatprep.subr.mxu0 0.0
    %1263 = vmatpush1.msra.mxu0 %v1239
    %1264 = vmatprep.subr.mxu0 0.0
    %1265 = vmatpush1.msra.mxu0 %v1240
    %1266 = vmatprep.subr.mxu0 0.0
    %1267 = vmatpush1.msra.mxu0 %v1241
    %1268 = vmatprep.subr.mxu0 0.0
    %1269 = vmatpush1.msra.mxu0 %v1242
    %1270 = vmatprep.subr.mxu0 0.0
    %1271 = vmatpush1.msra.mxu0 %v1243
    %1272 = vmatprep.subr.mxu0 0.0
    %1273 = vmatpush1.msra.mxu0 %v1244
    %1274 = vmatprep.subr.mxu0 0.0
    %1275 = vmatpush1.msra.mxu0 %v1245
    %1276 = vmatprep.subr.mxu0 0.0
    %1277 = vmatpush1.msra.mxu0 %v1246
    %1278 = vmatprep.subr.mxu0 0.0
    %1279 = vmatpush1.msra.mxu0 %v1247
    %1280 = vmatprep.subr.mxu0 0.0
    %1281 = vmatpush1.msra.mxu0 %v1248
    %1282 = vmatprep.subr.mxu0 0.0
    %1283 = vmatpush1.msra.mxu0 %v1249
    %1284 = vmatprep.subr.mxu0 0.0
    %1285 = vmatpush1.msra.mxu0 %v1250
    %1286 = vmatprep.subr.mxu0 0.0
    %1287 = vmatpush1.msra.mxu0 %v1251
    %1288 = vmatprep.subr.mxu0 0.0
    %1289 = vmatpush1.msra.mxu0 %v1252
    %1290 = vmatprep.subr.mxu0 0.0
    %1291 = vmatpush1.msra.mxu0 %v1253
    %1292 = vmatprep.subr.mxu0 0.0
    %1293 = vmatpush1.msra.mxu0 0.0
    %1294 = vmatprep.subr.mxu0 0.0
    %1295 = vmatpush1.msra.mxu0 0.0
    %1296 = vmatprep.subr.mxu0 0.0
    %1297 = vmatpush1.msra.mxu0 0.0
    %1298 = vmatprep.subr.mxu0 0.0
    %1299 = vmatpush1.msra.mxu0 0.0
    %1300 = vmatprep.subr.mxu0 0.0
    %1301 = vmatpush1.msra.mxu0 0.0
    %1302 = vmatprep.subr.mxu0 0.0
    %1303 = vmatpush1.msra.mxu0 0.0
    %1304 = vmatprep.subr.mxu0 0.0
    %1305 = vmatpush1.msra.mxu0 0.0
    %1306 = vmatprep.subr.mxu0 0.0
    %1307 = vmatpush1.msra.mxu0 0.0
    %1308 = vmatprep.subr.mxu0 0.0
    %1309 = vmatpush1.msra.mxu0 0.0
    %1310 = vmatprep.subr.mxu0 0.0
    %1311 = vmatpush1.msra.mxu0 0.0
    %1312 = vmatprep.subr.mxu0 0.0
    %1313 = vmatpush1.msra.mxu0 0.0
    %1314 = vmatprep.subr.mxu0 0.0
    %1315 = vmatpush1.msra.mxu0 0.0
    %1316 = vmatprep.subr.mxu0 0.0
    %1317 = vmatpush1.msra.mxu0 0.0
    %1318 = vmatprep.subr.mxu0 0.0
    %1319 = vmatpush1.msra.mxu0 0.0
    %1320 = vmatprep.subr.mxu0 0.0
    %1321 = vmatpush1.msra.mxu0 0.0
    %1322 = vmatprep.subr.mxu0 0.0
    %1323 = vmatpush1.msra.mxu0 0.0
    %1324 = vmatprep.mubr.f32.mxu0 0.0
    %1325 = vmatmul.mubr.f32.gmra.mrb[0].mxu0 %v30
    %v1326 = vpop.f32.mrb[0].mxu0
    %v1327 = vadd.f32 %v1258, %v1326
    %v1328 = vpop.f32.mrb[0].mxu0
    %1329 = vmatprep.mubr.f32.mxu0 0.0
    %1330 = vmatmul.mubr.f32.gmra.mrb[0].mxu0 %v31
    %v1331 = vpop.f32.mrb[0].mxu0
    %v1332 = vadd.f32 %v1258, %v1331
    %v1333 = vpop.f32.mrb[0].mxu0
    %1334 = vmatprep.mubr.f32.mxu0 0.0
    %1335 = vmatmul.mubr.f32.gmra.mrb[0].mxu0 %v32
    %v1336 = vpop.f32.mrb[0].mxu0
    %v1337 = vadd.f32 %v1258, %v1336
    %v1338 = vpop.f32.mrb[0].mxu0
    %1339 = vmatprep.mubr.f32.mxu0 0.0
    %1340 = vmatmul.mubr.f32.gmra.mrb[0].mxu0 %v33
    %v1341 = vpop.f32.mrb[0].mxu0
    %v1342 = vadd.f32 %v1258, %v1341
    %v1343 = vpop.f32.mrb[0].mxu0
    %1344 = vmatprep.mubr.f32.mxu0 0.0
    %1345 = vmatmul.mubr.f32.gmra.mrb[0].mxu0 %v34
    %v1346 = vpop.f32.mrb[0].mxu0
    %v1347 = vadd.f32 %v1258, %v1346
    %v1348 = vpop.f32.mrb[0].mxu0
    %1349 = vmatprep.mubr.f32.mxu0 0.0
    %1350 = vmatmul.mubr.f32.gmra.mrb[0].mxu0 %v35
    %v1351 = vpop.f32.mrb[0].mxu0
    %v1352 = vadd.f32 %v1258, %v1351
    %v1353 = vpop.f32.mrb[0].mxu0
    %1354 = vmatprep.mubr.f32.mxu0 0.0
    %1355 = vmatmul.mubr.f32.gmra.mrb[0].mxu0 %v36
    %v1356 = vpop.f32.mrb[0].mxu0
    %v1357 = vadd.f32 %v1258, %v1356
    %v1358 = vpop.f32.mrb[0].mxu0
    %1359 = vmatprep.mubr.f32.mxu0 0.0
    %1360 = vmatmul.mubr.f32.gmra.mrb[0].mxu0 %v37
    %v1361 = vpop.f32.mrb[0].mxu0
    %v1362 = vadd.f32 %v1258, %v1361
    %v1363 = vpop.f32.mrb[0].mxu0
    %1364 = vmatprep.mubr.f32.mxu0 0.0
    %1365 = vmatmul.mubr.f32.gmra.mrb[0].mxu0 %v38
    %v1366 = vpop.f32.mrb[0].mxu0
    %v1367 = vadd.f32 %v1258, %v1366
    %v1368 = vpop.f32.mrb[0].mxu0
    %1369 = vmatprep.mubr.f32.mxu0 0.0
    %1370 = vmatmul.mubr.f32.gmra.mrb[0].mxu0 %v39
    %v1371 = vpop.f32.mrb[0].mxu0
    %v1372 = vadd.f32 %v1258, %v1371
    %v1373 = vpop.f32.mrb[0].mxu0
    %1374 = vmatprep.mubr.f32.mxu0 0.0
    %1375 = vmatmul.mubr.f32.gmra.mrb[0].mxu0 %v40
    %v1376 = vpop.f32.mrb[0].mxu0
    %v1377 = vadd.f32 %v1258, %v1376
    %v1378 = vpop.f32.mrb[0].mxu0
    %1379 = vmatprep.mubr.f32.mxu0 0.0
    %1380 = vmatmul.mubr.f32.gmra.mrb[0].mxu0 %v41
    %v1381 = vpop.f32.mrb[0].mxu0
    %v1382 = vadd.f32 %v1258, %v1381
    %v1383 = vpop.f32.mrb[0].mxu0
    %1384 = vmatprep.mubr.f32.mxu0 0.0
    %1385 = vmatmul.mubr.f32.gmra.mrb[0].mxu0 %v42
    %v1386 = vpop.f32.mrb[0].mxu0
    %v1387 = vadd.f32 %v1258, %v1386
    %v1388 = vpop.f32.mrb[0].mxu0
    %1389 = vmatprep.mubr.f32.mxu0 0.0
    %1390 = vmatmul.mubr.f32.gmra.mrb[0].mxu0 %v43
    %v1391 = vpop.f32.mrb[0].mxu0
    %v1392 = vadd.f32 %v1258, %v1391
    %v1393 = vpop.f32.mrb[0].mxu0
    %1394 = vmatprep.mubr.f32.mxu0 0.0
    %1395 = vmatmul.mubr.f32.gmra.mrb[0].mxu0 %v44
    %v1396 = vpop.f32.mrb[0].mxu0
    %v1397 = vadd.f32 %v1258, %v1396
    %v1398 = vpop.f32.mrb[0].mxu0
    %1399 = vmatprep.mubr.f32.mxu0 0.0
    %1400 = vmatmul.mubr.f32.gmra.mrb[0].mxu0 %v45
    %v1401 = vpop.f32.mrb[0].mxu0
    %v1402 = vadd.f32 %v1258, %v1401
    %v1403 = vpop.f32.mrb[0].mxu0
    %1404 = vdwg.mxu0
    %v1405 = vmax.f32 %v1327, 0.0
    %v1406 = vmax.f32 %v1332, 0.0
    %v1407 = vmax.f32 %v1337, 0.0
    %v1408 = vmax.f32 %v1342, 0.0
    %v1409 = vmax.f32 %v1347, 0.0
    %v1410 = vmax.f32 %v1352, 0.0
    %v1411 = vmax.f32 %v1357, 0.0
    %v1412 = vmax.f32 %v1362, 0.0
    %v1413 = vmax.f32 %v1367, 0.0
    %v1414 = vmax.f32 %v1372, 0.0
    %v1415 = vmax.f32 %v1377, 0.0
    %v1416 = vmax.f32 %v1382, 0.0
    %v1417 = vmax.f32 %v1387, 0.0
    %v1418 = vmax.f32 %v1392, 0.0
    %v1419 = vmax.f32 %v1397, 0.0
    %v1420 = vmax.f32 %v1402, 0.0
    %v1421 = vsel %vm181, %v1405, 0.0
    %v1422 = vsel %vm181, %v1406, 0.0
    %v1423 = vadd.f32 %v1421, %v1422
    %v1424 = vsel %vm181, %v1407, 0.0
    %v1425 = vadd.f32 %v1423, %v1424
    %v1426 = vsel %vm181, %v1408, 0.0
    %v1427 = vadd.f32 %v1425, %v1426
    %v1428 = vsel %vm181, %v1409, 0.0
    %v1429 = vadd.f32 %v1427, %v1428
    %v1430 = vsel %vm181, %v1410, 0.0
    %v1431 = vadd.f32 %v1429, %v1430
    %v1432 = vsel %vm181, %v1411, 0.0
    %v1433 = vadd.f32 %v1431, %v1432
    %v1434 = vsel %vm181, %v1412, 0.0
    %v1435 = vadd.f32 %v1433, %v1434
    %v1436 = vsel %vm181, %v1413, 0.0
    %v1437 = vadd.f32 %v1435, %v1436
    %v1438 = vsel %vm181, %v1414, 0.0
    %v1439 = vadd.f32 %v1437, %v1438
    %v1440 = vsel %vm181, %v1415, 0.0
    %v1441 = vadd.f32 %v1439, %v1440
    %v1442 = vsel %vm181, %v1416, 0.0
    %v1443 = vadd.f32 %v1441, %v1442
    %v1444 = vsel %vm181, %v1417, 0.0
    %v1445 = vadd.f32 %v1443, %v1444
    %v1446 = vsel %vm181, %v1418, 0.0
    %v1447 = vadd.f32 %v1445, %v1446
    %v1448 = vsel %vm181, %v1419, 0.0
    %v1449 = vadd.f32 %v1447, %v1448
    %v1450 = vsel %vm181, %v1420, 0.0
    %v1451 = vadd.f32 %v1449, %v1450
    %v1452 = vrot.slane %v1451, 4
    %v1453 = vadd.f32 %v1451, %v1452
    %v1454 = vrot.slane %v1453, 2
    %v1455 = vadd.f32 %v1453, %v1454
    %v1456 = vrot.slane %v1455, 1
    %v1457 = vadd.f32 %v1455, %v1456
    %v1458 = vrcp.pop 128.0
    %v1459 = vmul.f32 %v1457, %v1458
    %v1460 = vsub.f32 0.0, %v1459
    %v1461 = vmul.f32 %v1460, 1.442695
    %v1462 = vpow.pop %v1461
    %v1463 = vadd.f32 %v1462, 1.0
    %v1464 = vrcp.pop %v1463
    %v1465 = vld [vmem:[%s7] sm:$0xff]
    %v1466 = vld [vmem:[%s7 + $0x8] sm:$0xff]
    %v1467 = vld [vmem:[%s7 + $0x10] sm:$0xff]
    %v1468 = vld [vmem:[%s7 + $0x18] sm:$0xff]
    %v1470 = vsel %vm181, %v1464, 0
    %1472 = vmatprep.subr.mxu0 0.0
    %1473 = vmatpush1.msra.mxu0 %v1465
    %1474 = vmatprep.subr.mxu0 0.0
    %1475 = vmatpush1.msra.mxu0 %v1466
    %1476 = vmatprep.subr.mxu0 0.0
    %1477 = vmatpush1.msra.mxu0 %v1467
    %1478 = vmatprep.subr.mxu0 0.0
    %1479 = vmatpush1.msra.mxu0 %v1468
    %1480 = vmatprep.subr.mxu0 0.0
    %1481 = vmatpush1.msra.mxu0 0.0
    %1482 = vmatprep.subr.mxu0 0.0
    %1483 = vmatpush1.msra.mxu0 0.0
    %1484 = vmatprep.subr.mxu0 0.0
    %1485 = vmatpush1.msra.mxu0 0.0
    %1486 = vmatprep.subr.mxu0 0.0
    %1487 = vmatpush1.msra.mxu0 0.0
    %1488 = vmatprep.subr.mxu0 0.0
    %1489 = vmatpush1.msra.mxu0 0.0
    %1490 = vmatprep.subr.mxu0 0.0
    %1491 = vmatpush1.msra.mxu0 0.0
    %1492 = vmatprep.subr.mxu0 0.0
    %1493 = vmatpush1.msra.mxu0 0.0
    %1494 = vmatprep.subr.mxu0 0.0
    %1495 = vmatpush1.msra.mxu0 0.0
    %1496 = vmatprep.subr.mxu0 0.0
    %1497 = vmatpush1.msra.mxu0 0.0
    %1498 = vmatprep.subr.mxu0 0.0
    %1499 = vmatpush1.msra.mxu0 0.0
    %1500 = vmatprep.subr.mxu0 0.0
    %1501 = vmatpush1.msra.mxu0 0.0
    %1502 = vmatprep.subr.mxu0 0.0
    %1503 = vmatpush1.msra.mxu0 0.0
    %1504 = vmatprep.subr.mxu0 0.0
    %1505 = vmatpush1.msra.mxu0 0.0
    %1506 = vmatprep.subr.mxu0 0.0
    %1507 = vmatpush1.msra.mxu0 0.0
    %1508 = vmatprep.subr.mxu0 0.0
    %1509 = vmatpush1.msra.mxu0 0.0
    %1510 = vmatprep.subr.mxu0 0.0
    %1511 = vmatpush1.msra.mxu0 0.0
    %1512 = vmatprep.subr.mxu0 0.0
    %1513 = vmatpush1.msra.mxu0 0.0
    %1514 = vmatprep.subr.mxu0 0.0
    %1515 = vmatpush1.msra.mxu0 0.0
    %1516 = vmatprep.subr.mxu0 0.0
    %1517 = vmatpush1.msra.mxu0 0.0
    %1518 = vmatprep.subr.mxu0 0.0
    %1519 = vmatpush1.msra.mxu0 0.0
    %1520 = vmatprep.subr.mxu0 0.0
    %1521 = vmatpush1.msra.mxu0 0.0
    %1522 = vmatprep.subr.mxu0 0.0
    %1523 = vmatpush1.msra.mxu0 0.0
    %1524 = vmatprep.subr.mxu0 0.0
    %1525 = vmatpush1.msra.mxu0 0.0
    %1526 = vmatprep.subr.mxu0 0.0
    %1527 = vmatpush1.msra.mxu0 0.0
    %1528 = vmatprep.subr.mxu0 0.0
    %1529 = vmatpush1.msra.mxu0 0.0
    %1530 = vmatprep.subr.mxu0 0.0
    %1531 = vmatpush1.msra.mxu0 0.0
    %1532 = vmatprep.subr.mxu0 0.0
    %1533 = vmatpush1.msra.mxu0 0.0
    %1534 = vmatprep.subr.mxu0 0.0
    %1535 = vmatpush1.msra.mxu0 0.0
    %1536 = vmatprep.mubr.f32.mxu0 0.0
    %1537 = vmatmul.mubr.f32.gmra.mrb[0].mxu0 %v1470
    %v1538 = vpop.f32.mrb[0].mxu0
    %v1539 = vadd.f32 0.0, %v1538
    %v1540 = vpop.f32.mrb[0].mxu0
    %1541 = vdwg.mxu0
    %v1542 = vlaneseq
    %v1543 = vshrl.u32 %v1542, 7
    %v1544 = vsub.s32 0, %v1543
    %v1545 = vrot.slane %v1539, %v1544
    %v1546 = vmul.f32 %v1405, %v1545
    %v1547 = vmul.f32 %v1406, %v1545
    %v1548 = vmul.f32 %v1407, %v1545
    %v1549 = vmul.f32 %v1408, %v1545
    %v1550 = vmul.f32 %v1409, %v1545
    %v1551 = vmul.f32 %v1410, %v1545
    %v1552 = vmul.f32 %v1411, %v1545
    %v1553 = vmul.f32 %v1412, %v1545
    %v1554 = vmul.f32 %v1413, %v1545
    %v1555 = vmul.f32 %v1414, %v1545
    %v1556 = vmul.f32 %v1415, %v1545
    %v1557 = vmul.f32 %v1416, %v1545
    %v1558 = vmul.f32 %v1417, %v1545
    %v1559 = vmul.f32 %v1418, %v1545
    %v1560 = vmul.f32 %v1419, %v1545
    %v1561 = vmul.f32 %v1420, %v1545
    %v1562 = vsel %vm181, %v1546, 0.0
    %1563 = vadd.xlane.f32.xlu0 %v1562
    %v1564 = vpop.xlane.xlu0 %1563
    %v1565 = vsel %vm181, %v1547, 0.0
    %1566 = vadd.xlane.f32.xlu0 %v1565
    %v1567 = vpop.xlane.xlu0 %1566
    %v1568 = vsel %vm181, %v1548, 0.0
    %1569 = vadd.xlane.f32.xlu0 %v1568
    %v1570 = vpop.xlane.xlu0 %1569
    %v1571 = vsel %vm181, %v1549, 0.0
    %1572 = vadd.xlane.f32.xlu0 %v1571
    %v1573 = vpop.xlane.xlu0 %1572
    %v1574 = vsel %vm181, %v1550, 0.0
    %1575 = vadd.xlane.f32.xlu0 %v1574
    %v1576 = vpop.xlane.xlu0 %1575
    %v1577 = vsel %vm181, %v1551, 0.0
    %1578 = vadd.xlane.f32.xlu0 %v1577
    %v1579 = vpop.xlane.xlu0 %1578
    %v1580 = vsel %vm181, %v1552, 0.0
    %1581 = vadd.xlane.f32.xlu0 %v1580
    %v1582 = vpop.xlane.xlu0 %1581
    %v1583 = vsel %vm181, %v1553, 0.0
    %1584 = vadd.xlane.f32.xlu0 %v1583
    %v1585 = vpop.xlane.xlu0 %1584
    %v1586 = vsel %vm181, %v1554, 0.0
    %1587 = vadd.xlane.f32.xlu0 %v1586
    %v1588 = vpop.xlane.xlu0 %1587
    %v1589 = vsel %vm181, %v1555, 0.0
    %1590 = vadd.xlane.f32.xlu0 %v1589
    %v1591 = vpop.xlane.xlu0 %1590
    %v1592 = vsel %vm181, %v1556, 0.0
    %1593 = vadd.xlane.f32.xlu0 %v1592
    %v1594 = vpop.xlane.xlu0 %1593
    %v1595 = vsel %vm181, %v1557, 0.0
    %1596 = vadd.xlane.f32.xlu0 %v1595
    %v1597 = vpop.xlane.xlu0 %1596
    %v1598 = vsel %vm181, %v1558, 0.0
    %1599 = vadd.xlane.f32.xlu0 %v1598
    %v1600 = vpop.xlane.xlu0 %1599
    %v1601 = vsel %vm181, %v1559, 0.0
    %1602 = vadd.xlane.f32.xlu0 %v1601
    %v1603 = vpop.xlane.xlu0 %1602
    %v1604 = vsel %vm181, %v1560, 0.0
    %1605 = vadd.xlane.f32.xlu0 %v1604
    %v1606 = vpop.xlane.xlu0 %1605
    %v1607 = vsel %vm181, %v1561, 0.0
    %1608 = vadd.xlane.f32.xlu0 %v1607
    %v1609 = vpop.xlane.xlu0 %1608
    %1611 = vrot.lane.b32.xlu0 %v1545, 32
    %v1612 = vpop.permute.xlu0 %1611
    %v1614 = vmul.f32 %v1405, %v1612
    %v1615 = vmul.f32 %v1406, %v1612
    %v1616 = vmul.f32 %v1407, %v1612
    %v1617 = vmul.f32 %v1408, %v1612
    %v1618 = vmul.f32 %v1409, %v1612
    %v1619 = vmul.f32 %v1410, %v1612
    %v1620 = vmul.f32 %v1411, %v1612
    %v1621 = vmul.f32 %v1412, %v1612
    %v1622 = vmul.f32 %v1413, %v1612
    %v1623 = vmul.f32 %v1414, %v1612
    %v1624 = vmul.f32 %v1415, %v1612
    %v1625 = vmul.f32 %v1416, %v1612
    %v1626 = vmul.f32 %v1417, %v1612
    %v1627 = vmul.f32 %v1418, %v1612
    %v1628 = vmul.f32 %v1419, %v1612
    %v1629 = vmul.f32 %v1420, %v1612
    %1646 = vrot.lane.b32.xlu0 %v1614, 96
    %v1647 = vpop.permute.xlu0 %1646
    %1648 = vrot.lane.b32.xlu0 %v1615, 96
    %v1649 = vpop.permute.xlu0 %1648
    %1650 = vrot.lane.b32.xlu0 %v1616, 96
    %v1651 = vpop.permute.xlu0 %1650
    %1652 = vrot.lane.b32.xlu0 %v1617, 96
    %v1653 = vpop.permute.xlu0 %1652
    %1654 = vrot.lane.b32.xlu0 %v1618, 96
    %v1655 = vpop.permute.xlu0 %1654
    %1656 = vrot.lane.b32.xlu0 %v1619, 96
    %v1657 = vpop.permute.xlu0 %1656
    %1658 = vrot.lane.b32.xlu0 %v1620, 96
    %v1659 = vpop.permute.xlu0 %1658
    %1660 = vrot.lane.b32.xlu0 %v1621, 96
    %v1661 = vpop.permute.xlu0 %1660
    %1662 = vrot.lane.b32.xlu0 %v1622, 96
    %v1663 = vpop.permute.xlu0 %1662
    %1664 = vrot.lane.b32.xlu0 %v1623, 96
    %v1665 = vpop.permute.xlu0 %1664
    %1666 = vrot.lane.b32.xlu0 %v1624, 96
    %v1667 = vpop.permute.xlu0 %1666
    %1668 = vrot.lane.b32.xlu0 %v1625, 96
    %v1669 = vpop.permute.xlu0 %1668
    %1670 = vrot.lane.b32.xlu0 %v1626, 96
    %v1671 = vpop.permute.xlu0 %1670
    %1672 = vrot.lane.b32.xlu0 %v1627, 96
    %v1673 = vpop.permute.xlu0 %1672
    %1674 = vrot.lane.b32.xlu0 %v1628, 96
    %v1675 = vpop.permute.xlu0 %1674
    %1676 = vrot.lane.b32.xlu0 %v1629, 96
    %v1677 = vpop.permute.xlu0 %1676
    %v1694 = vsel %vm181, %v1647, 0.0
    %1695 = vadd.xlane.f32.xlu0 %v1694
    %v1696 = vpop.xlane.xlu0 %1695
    %v1697 = vsel %vm181, %v1649, 0.0
    %1698 = vadd.xlane.f32.xlu0 %v1697
    %v1699 = vpop.xlane.xlu0 %1698
    %v1700 = vsel %vm181, %v1651, 0.0
    %1701 = vadd.xlane.f32.xlu0 %v1700
    %v1702 = vpop.xlane.xlu0 %1701
    %v1703 = vsel %vm181, %v1653, 0.0
    %1704 = vadd.xlane.f32.xlu0 %v1703
    %v1705 = vpop.xlane.xlu0 %1704
    %v1706 = vsel %vm181, %v1655, 0.0
    %1707 = vadd.xlane.f32.xlu0 %v1706
    %v1708 = vpop.xlane.xlu0 %1707
    %v1709 = vsel %vm181, %v1657, 0.0
    %1710 = vadd.xlane.f32.xlu0 %v1709
    %v1711 = vpop.xlane.xlu0 %1710
    %v1712 = vsel %vm181, %v1659, 0.0
    %1713 = vadd.xlane.f32.xlu0 %v1712
    %v1714 = vpop.xlane.xlu0 %1713
    %v1715 = vsel %vm181, %v1661, 0.0
    %1716 = vadd.xlane.f32.xlu0 %v1715
    %v1717 = vpop.xlane.xlu0 %1716
    %v1718 = vsel %vm181, %v1663, 0.0
    %1719 = vadd.xlane.f32.xlu0 %v1718
    %v1720 = vpop.xlane.xlu0 %1719
    %v1721 = vsel %vm181, %v1665, 0.0
    %1722 = vadd.xlane.f32.xlu0 %v1721
    %v1723 = vpop.xlane.xlu0 %1722
    %v1724 = vsel %vm181, %v1667, 0.0
    %1725 = vadd.xlane.f32.xlu0 %v1724
    %v1726 = vpop.xlane.xlu0 %1725
    %v1727 = vsel %vm181, %v1669, 0.0
    %1728 = vadd.xlane.f32.xlu0 %v1727
    %v1729 = vpop.xlane.xlu0 %1728
    %v1730 = vsel %vm181, %v1671, 0.0
    %1731 = vadd.xlane.f32.xlu0 %v1730
    %v1732 = vpop.xlane.xlu0 %1731
    %v1733 = vsel %vm181, %v1673, 0.0
    %1734 = vadd.xlane.f32.xlu0 %v1733
    %v1735 = vpop.xlane.xlu0 %1734
    %v1736 = vsel %vm181, %v1675, 0.0
    %1737 = vadd.xlane.f32.xlu0 %v1736
    %v1738 = vpop.xlane.xlu0 %1737
    %v1739 = vsel %vm181, %v1677, 0.0
    %1740 = vadd.xlane.f32.xlu0 %v1739
    %v1741 = vpop.xlane.xlu0 %1740
    %v1742 = vmax.f32 %v1564, 0.0
    %v1743 = vmax.f32 %v1567, 0.0
    %v1744 = vmax.f32 %v1570, 0.0
    %v1745 = vmax.f32 %v1573, 0.0
    %v1746 = vmax.f32 %v1576, 0.0
    %v1747 = vmax.f32 %v1579, 0.0
    %v1748 = vmax.f32 %v1582, 0.0
    %v1749 = vmax.f32 %v1585, 0.0
    %v1750 = vmax.f32 %v1588, 0.0
    %v1751 = vmax.f32 %v1591, 0.0
    %v1752 = vmax.f32 %v1594, 0.0
    %v1753 = vmax.f32 %v1597, 0.0
    %v1754 = vmax.f32 %v1600, 0.0
    %v1755 = vmax.f32 %v1603, 0.0
    %v1756 = vmax.f32 %v1606, 0.0
    %v1757 = vmax.f32 %v1609, 0.0
    %v1758 = vsub.f32 %v1742, %v1564
    %v1759 = vsub.f32 %v1743, %v1567
    %v1760 = vsub.f32 %v1744, %v1570
    %v1761 = vsub.f32 %v1745, %v1573
    %v1762 = vsub.f32 %v1746, %v1576
    %v1763 = vsub.f32 %v1747, %v1579
    %v1764 = vsub.f32 %v1748, %v1582
    %v1765 = vsub.f32 %v1749, %v1585
    %v1766 = vsub.f32 %v1750, %v1588
    %v1767 = vsub.f32 %v1751, %v1591
    %v1768 = vsub.f32 %v1752, %v1594
    %v1769 = vsub.f32 %v1753, %v1597
    %v1770 = vsub.f32 %v1754, %v1600
    %v1771 = vsub.f32 %v1755, %v1603
    %v1772 = vsub.f32 %v1756, %v1606
    %v1773 = vsub.f32 %v1757, %v1609
    %v1774 = vand.u32 2147483647, %v1564
    %v1775 = vand.u32 2147483647, %v1567
    %v1776 = vand.u32 2147483647, %v1570
    %v1777 = vand.u32 2147483647, %v1573
    %v1778 = vand.u32 2147483647, %v1576
    %v1779 = vand.u32 2147483647, %v1579
    %v1780 = vand.u32 2147483647, %v1582
    %v1781 = vand.u32 2147483647, %v1585
    %v1782 = vand.u32 2147483647, %v1588
    %v1783 = vand.u32 2147483647, %v1591
    %v1784 = vand.u32 2147483647, %v1594
    %v1785 = vand.u32 2147483647, %v1597
    %v1786 = vand.u32 2147483647, %v1600
    %v1787 = vand.u32 2147483647, %v1603
    %v1788 = vand.u32 2147483647, %v1606
    %v1789 = vand.u32 2147483647, %v1609
    %v1790 = vsub.f32 0.0, %v1774
    %v1791 = vsub.f32 0.0, %v1775
    %v1792 = vsub.f32 0.0, %v1776
    %v1793 = vsub.f32 0.0, %v1777
    %v1794 = vsub.f32 0.0, %v1778
    %v1795 = vsub.f32 0.0, %v1779
    %v1796 = vsub.f32 0.0, %v1780
    %v1797 = vsub.f32 0.0, %v1781
    %v1798 = vsub.f32 0.0, %v1782
    %v1799 = vsub.f32 0.0, %v1783
    %v1800 = vsub.f32 0.0, %v1784
    %v1801 = vsub.f32 0.0, %v1785
    %v1802 = vsub.f32 0.0, %v1786
    %v1803 = vsub.f32 0.0, %v1787
    %v1804 = vsub.f32 0.0, %v1788
    %v1805 = vsub.f32 0.0, %v1789
    %v1806 = vmul.f32 %v1790, 1.442695
    %v1807 = vpow.pop %v1806
    %v1808 = vmul.f32 %v1791, 1.442695
    %v1809 = vpow.pop %v1808
    %v1810 = vmul.f32 %v1792, 1.442695
    %v1811 = vpow.pop %v1810
    %v1812 = vmul.f32 %v1793, 1.442695
    %v1813 = vpow.pop %v1812
    %v1814 = vmul.f32 %v1794, 1.442695
    %v1815 = vpow.pop %v1814
    %v1816 = vmul.f32 %v1795, 1.442695
    %v1817 = vpow.pop %v1816
    %v1818 = vmul.f32 %v1796, 1.442695
    %v1819 = vpow.pop %v1818
    %v1820 = vmul.f32 %v1797, 1.442695
    %v1821 = vpow.pop %v1820
    %v1822 = vmul.f32 %v1798, 1.442695
    %v1823 = vpow.pop %v1822
    %v1824 = vmul.f32 %v1799, 1.442695
    %v1825 = vpow.pop %v1824
    %v1826 = vmul.f32 %v1800, 1.442695
    %v1827 = vpow.pop %v1826
    %v1828 = vmul.f32 %v1801, 1.442695
    %v1829 = vpow.pop %v1828
    %v1830 = vmul.f32 %v1802, 1.442695
    %v1831 = vpow.pop %v1830
    %v1832 = vmul.f32 %v1803, 1.442695
    %v1833 = vpow.pop %v1832
    %v1834 = vmul.f32 %v1804, 1.442695
    %v1835 = vpow.pop %v1834
    %v1836 = vmul.f32 %v1805, 1.442695
    %v1837 = vpow.pop %v1836
    %v1838 = vadd.f32 %v1807, 1.0
    %v1839 = vadd.f32 %v1809, 1.0
    %v1840 = vadd.f32 %v1811, 1.0
    %v1841 = vadd.f32 %v1813, 1.0
    %v1842 = vadd.f32 %v1815, 1.0
    %v1843 = vadd.f32 %v1817, 1.0
    %v1844 = vadd.f32 %v1819, 1.0
    %v1845 = vadd.f32 %v1821, 1.0
    %v1846 = vadd.f32 %v1823, 1.0
    %v1847 = vadd.f32 %v1825, 1.0
    %v1848 = vadd.f32 %v1827, 1.0
    %v1849 = vadd.f32 %v1829, 1.0
    %v1850 = vadd.f32 %v1831, 1.0
    %v1851 = vadd.f32 %v1833, 1.0
    %v1852 = vadd.f32 %v1835, 1.0
    %v1853 = vadd.f32 %v1837, 1.0
    %v1854 = vlog2.pop %v1838
    %v1855 = vmul.f32 %v1854, 0.6931472
    %v1856 = vlog2.pop %v1839
    %v1857 = vmul.f32 %v1856, 0.6931472
    %v1858 = vlog2.pop %v1840
    %v1859 = vmul.f32 %v1858, 0.6931472
    %v1860 = vlog2.pop %v1841
    %v1861 = vmul.f32 %v1860, 0.6931472
    %v1862 = vlog2.pop %v1842
    %v1863 = vmul.f32 %v1862, 0.6931472
    %v1864 = vlog2.pop %v1843
    %v1865 = vmul.f32 %v1864, 0.6931472
    %v1866 = vlog2.pop %v1844
    %v1867 = vmul.f32 %v1866, 0.6931472
    %v1868 = vlog2.pop %v1845
    %v1869 = vmul.f32 %v1868, 0.6931472
    %v1870 = vlog2.pop %v1846
    %v1871 = vmul.f32 %v1870, 0.6931472
    %v1872 = vlog2.pop %v1847
    %v1873 = vmul.f32 %v1872, 0.6931472
    %v1874 = vlog2.pop %v1848
    %v1875 = vmul.f32 %v1874, 0.6931472
    %v1876 = vlog2.pop %v1849
    %v1877 = vmul.f32 %v1876, 0.6931472
    %v1878 = vlog2.pop %v1850
    %v1879 = vmul.f32 %v1878, 0.6931472
    %v1880 = vlog2.pop %v1851
    %v1881 = vmul.f32 %v1880, 0.6931472
    %v1882 = vlog2.pop %v1852
    %v1883 = vmul.f32 %v1882, 0.6931472
    %v1884 = vlog2.pop %v1853
    %v1885 = vmul.f32 %v1884, 0.6931472
    %v1886 = vadd.f32 %v1758, %v1855
    %v1887 = vadd.f32 %v1759, %v1857
    %v1888 = vadd.f32 %v1760, %v1859
    %v1889 = vadd.f32 %v1761, %v1861
    %v1890 = vadd.f32 %v1762, %v1863
    %v1891 = vadd.f32 %v1763, %v1865
    %v1892 = vadd.f32 %v1764, %v1867
    %v1893 = vadd.f32 %v1765, %v1869
    %v1894 = vadd.f32 %v1766, %v1871
    %v1895 = vadd.f32 %v1767, %v1873
    %v1896 = vadd.f32 %v1768, %v1875
    %v1897 = vadd.f32 %v1769, %v1877
    %v1898 = vadd.f32 %v1770, %v1879
    %v1899 = vadd.f32 %v1771, %v1881
    %v1900 = vadd.f32 %v1772, %v1883
    %v1901 = vadd.f32 %v1773, %v1885
    %vm1902 = vcmask 7168
    %v1903 = vsel %vm1902, %v1886, 0.0
    %v1904 = vsel %vm1902, %v1887, 0.0
    %v1905 = vadd.f32 %v1903, %v1904
    %v1906 = vsel %vm1902, %v1888, 0.0
    %v1907 = vadd.f32 %v1905, %v1906
    %v1908 = vsel %vm1902, %v1889, 0.0
    %v1909 = vadd.f32 %v1907, %v1908
    %v1910 = vsel %vm1902, %v1890, 0.0
    %v1911 = vadd.f32 %v1909, %v1910
    %v1912 = vsel %vm1902, %v1891, 0.0
    %v1913 = vadd.f32 %v1911, %v1912
    %v1914 = vsel %vm1902, %v1892, 0.0
    %v1915 = vadd.f32 %v1913, %v1914
    %v1916 = vsel %vm1902, %v1893, 0.0
    %v1917 = vadd.f32 %v1915, %v1916
    %v1918 = vsel %vm1902, %v1894, 0.0
    %v1919 = vadd.f32 %v1917, %v1918
    %v1920 = vsel %vm1902, %v1895, 0.0
    %v1921 = vadd.f32 %v1919, %v1920
    %v1922 = vsel %vm1902, %v1896, 0.0
    %v1923 = vadd.f32 %v1921, %v1922
    %v1924 = vsel %vm1902, %v1897, 0.0
    %v1925 = vadd.f32 %v1923, %v1924
    %v1926 = vsel %vm1902, %v1898, 0.0
    %v1927 = vadd.f32 %v1925, %v1926
    %v1928 = vsel %vm1902, %v1899, 0.0
    %v1929 = vadd.f32 %v1927, %v1928
    %v1930 = vsel %vm1902, %v1900, 0.0
    %v1931 = vadd.f32 %v1929, %v1930
    %v1932 = vsel %vm1902, %v1901, 0.0
    %v1933 = vadd.f32 %v1931, %v1932
    %1934 = vadd.xlane.f32.xlu0 %v1933
    %v1935 = vpop.xlane.xlu0 %1934
    %v1936 = vrot.slane %v1935, 4
    %v1937 = vadd.f32 %v1935, %v1936
    %v1938 = vrot.slane %v1937, 2
    %v1939 = vadd.f32 %v1937, %v1938
    %v1940 = vrot.slane %v1939, 1
    %v1941 = vadd.f32 %v1939, %v1940
    %s1942 = vtos %v1941
    %v1943 = vrcp.pop 128.0
    %s1944 = vtos %v1943
    %s1945 = smul.f32 %s1942, %s1944
    %v1946 = vmax.f32 %v1696, 0.0
    %v1947 = vmax.f32 %v1699, 0.0
    %v1948 = vmax.f32 %v1702, 0.0
    %v1949 = vmax.f32 %v1705, 0.0
    %v1950 = vmax.f32 %v1708, 0.0
    %v1951 = vmax.f32 %v1711, 0.0
    %v1952 = vmax.f32 %v1714, 0.0
    %v1953 = vmax.f32 %v1717, 0.0
    %v1954 = vmax.f32 %v1720, 0.0
    %v1955 = vmax.f32 %v1723, 0.0
    %v1956 = vmax.f32 %v1726, 0.0
    %v1957 = vmax.f32 %v1729, 0.0
    %v1958 = vmax.f32 %v1732, 0.0
    %v1959 = vmax.f32 %v1735, 0.0
    %v1960 = vmax.f32 %v1738, 0.0
    %v1961 = vmax.f32 %v1741, 0.0
    %v1962 = vand.u32 2147483647, %v1696
    %v1963 = vand.u32 2147483647, %v1699
    %v1964 = vand.u32 2147483647, %v1702
    %v1965 = vand.u32 2147483647, %v1705
    %v1966 = vand.u32 2147483647, %v1708
    %v1967 = vand.u32 2147483647, %v1711
    %v1968 = vand.u32 2147483647, %v1714
    %v1969 = vand.u32 2147483647, %v1717
    %v1970 = vand.u32 2147483647, %v1720
    %v1971 = vand.u32 2147483647, %v1723
    %v1972 = vand.u32 2147483647, %v1726
    %v1973 = vand.u32 2147483647, %v1729
    %v1974 = vand.u32 2147483647, %v1732
    %v1975 = vand.u32 2147483647, %v1735
    %v1976 = vand.u32 2147483647, %v1738
    %v1977 = vand.u32 2147483647, %v1741
    %v1978 = vsub.f32 0.0, %v1962
    %v1979 = vsub.f32 0.0, %v1963
    %v1980 = vsub.f32 0.0, %v1964
    %v1981 = vsub.f32 0.0, %v1965
    %v1982 = vsub.f32 0.0, %v1966
    %v1983 = vsub.f32 0.0, %v1967
    %v1984 = vsub.f32 0.0, %v1968
    %v1985 = vsub.f32 0.0, %v1969
    %v1986 = vsub.f32 0.0, %v1970
    %v1987 = vsub.f32 0.0, %v1971
    %v1988 = vsub.f32 0.0, %v1972
    %v1989 = vsub.f32 0.0, %v1973
    %v1990 = vsub.f32 0.0, %v1974
    %v1991 = vsub.f32 0.0, %v1975
    %v1992 = vsub.f32 0.0, %v1976
    %v1993 = vsub.f32 0.0, %v1977
    %v1994 = vmul.f32 %v1978, 1.442695
    %v1995 = vpow.pop %v1994
    %v1996 = vmul.f32 %v1979, 1.442695
    %v1997 = vpow.pop %v1996
    %v1998 = vmul.f32 %v1980, 1.442695
    %v1999 = vpow.pop %v1998
    %v2000 = vmul.f32 %v1981, 1.442695
    %v2001 = vpow.pop %v2000
    %v2002 = vmul.f32 %v1982, 1.442695
    %v2003 = vpow.pop %v2002
    %v2004 = vmul.f32 %v1983, 1.442695
    %v2005 = vpow.pop %v2004
    %v2006 = vmul.f32 %v1984, 1.442695
    %v2007 = vpow.pop %v2006
    %v2008 = vmul.f32 %v1985, 1.442695
    %v2009 = vpow.pop %v2008
    %v2010 = vmul.f32 %v1986, 1.442695
    %v2011 = vpow.pop %v2010
    %v2012 = vmul.f32 %v1987, 1.442695
    %v2013 = vpow.pop %v2012
    %v2014 = vmul.f32 %v1988, 1.442695
    %v2015 = vpow.pop %v2014
    %v2016 = vmul.f32 %v1989, 1.442695
    %v2017 = vpow.pop %v2016
    %v2018 = vmul.f32 %v1990, 1.442695
    %v2019 = vpow.pop %v2018
    %v2020 = vmul.f32 %v1991, 1.442695
    %v2021 = vpow.pop %v2020
    %v2022 = vmul.f32 %v1992, 1.442695
    %v2023 = vpow.pop %v2022
    %v2024 = vmul.f32 %v1993, 1.442695
    %v2025 = vpow.pop %v2024
    %v2026 = vadd.f32 %v1995, 1.0
    %v2027 = vadd.f32 %v1997, 1.0
    %v2028 = vadd.f32 %v1999, 1.0
    %v2029 = vadd.f32 %v2001, 1.0
    %v2030 = vadd.f32 %v2003, 1.0
    %v2031 = vadd.f32 %v2005, 1.0
    %v2032 = vadd.f32 %v2007, 1.0
    %v2033 = vadd.f32 %v2009, 1.0
    %v2034 = vadd.f32 %v2011, 1.0
    %v2035 = vadd.f32 %v2013, 1.0
    %v2036 = vadd.f32 %v2015, 1.0
    %v2037 = vadd.f32 %v2017, 1.0
    %v2038 = vadd.f32 %v2019, 1.0
    %v2039 = vadd.f32 %v2021, 1.0
    %v2040 = vadd.f32 %v2023, 1.0
    %v2041 = vadd.f32 %v2025, 1.0
    %v2042 = vlog2.pop %v2026
    %v2043 = vmul.f32 %v2042, 0.6931472
    %v2044 = vlog2.pop %v2027
    %v2045 = vmul.f32 %v2044, 0.6931472
    %v2046 = vlog2.pop %v2028
    %v2047 = vmul.f32 %v2046, 0.6931472
    %v2048 = vlog2.pop %v2029
    %v2049 = vmul.f32 %v2048, 0.6931472
    %v2050 = vlog2.pop %v2030
    %v2051 = vmul.f32 %v2050, 0.6931472
    %v2052 = vlog2.pop %v2031
    %v2053 = vmul.f32 %v2052, 0.6931472
    %v2054 = vlog2.pop %v2032
    %v2055 = vmul.f32 %v2054, 0.6931472
    %v2056 = vlog2.pop %v2033
    %v2057 = vmul.f32 %v2056, 0.6931472
    %v2058 = vlog2.pop %v2034
    %v2059 = vmul.f32 %v2058, 0.6931472
    %v2060 = vlog2.pop %v2035
    %v2061 = vmul.f32 %v2060, 0.6931472
    %v2062 = vlog2.pop %v2036
    %v2063 = vmul.f32 %v2062, 0.6931472
    %v2064 = vlog2.pop %v2037
    %v2065 = vmul.f32 %v2064, 0.6931472
    %v2066 = vlog2.pop %v2038
    %v2067 = vmul.f32 %v2066, 0.6931472
    %v2068 = vlog2.pop %v2039
    %v2069 = vmul.f32 %v2068, 0.6931472
    %v2070 = vlog2.pop %v2040
    %v2071 = vmul.f32 %v2070, 0.6931472
    %v2072 = vlog2.pop %v2041
    %v2073 = vmul.f32 %v2072, 0.6931472
    %v2074 = vadd.f32 %v1946, %v2043
    %v2075 = vadd.f32 %v1947, %v2045
    %v2076 = vadd.f32 %v1948, %v2047
    %v2077 = vadd.f32 %v1949, %v2049
    %v2078 = vadd.f32 %v1950, %v2051
    %v2079 = vadd.f32 %v1951, %v2053
    %v2080 = vadd.f32 %v1952, %v2055
    %v2081 = vadd.f32 %v1953, %v2057
    %v2082 = vadd.f32 %v1954, %v2059
    %v2083 = vadd.f32 %v1955, %v2061
    %v2084 = vadd.f32 %v1956, %v2063
    %v2085 = vadd.f32 %v1957, %v2065
    %v2086 = vadd.f32 %v1958, %v2067
    %v2087 = vadd.f32 %v1959, %v2069
    %v2088 = vadd.f32 %v1960, %v2071
    %v2089 = vadd.f32 %v1961, %v2073
    %v2090 = vsel %vm1902, %v2074, 0.0
    %v2091 = vsel %vm1902, %v2075, 0.0
    %v2092 = vadd.f32 %v2090, %v2091
    %v2093 = vsel %vm1902, %v2076, 0.0
    %v2094 = vadd.f32 %v2092, %v2093
    %v2095 = vsel %vm1902, %v2077, 0.0
    %v2096 = vadd.f32 %v2094, %v2095
    %v2097 = vsel %vm1902, %v2078, 0.0
    %v2098 = vadd.f32 %v2096, %v2097
    %v2099 = vsel %vm1902, %v2079, 0.0
    %v2100 = vadd.f32 %v2098, %v2099
    %v2101 = vsel %vm1902, %v2080, 0.0
    %v2102 = vadd.f32 %v2100, %v2101
    %v2103 = vsel %vm1902, %v2081, 0.0
    %v2104 = vadd.f32 %v2102, %v2103
    %v2105 = vsel %vm1902, %v2082, 0.0
    %v2106 = vadd.f32 %v2104, %v2105
    %v2107 = vsel %vm1902, %v2083, 0.0
    %v2108 = vadd.f32 %v2106, %v2107
    %v2109 = vsel %vm1902, %v2084, 0.0
    %v2110 = vadd.f32 %v2108, %v2109
    %v2111 = vsel %vm1902, %v2085, 0.0
    %v2112 = vadd.f32 %v2110, %v2111
    %v2113 = vsel %vm1902, %v2086, 0.0
    %v2114 = vadd.f32 %v2112, %v2113
    %v2115 = vsel %vm1902, %v2087, 0.0
    %v2116 = vadd.f32 %v2114, %v2115
    %v2117 = vsel %vm1902, %v2088, 0.0
    %v2118 = vadd.f32 %v2116, %v2117
    %v2119 = vsel %vm1902, %v2089, 0.0
    %v2120 = vadd.f32 %v2118, %v2119
    %2121 = vadd.xlane.f32.xlu0 %v2120
    %v2122 = vpop.xlane.xlu0 %2121
    %v2123 = vrot.slane %v2122, 4
    %v2124 = vadd.f32 %v2122, %v2123
    %v2125 = vrot.slane %v2124, 2
    %v2126 = vadd.f32 %v2124, %v2125
    %v2127 = vrot.slane %v2126, 1
    %v2128 = vadd.f32 %v2126, %v2127
    %s2129 = vtos %v2128
    %v2130 = vrcp.pop 128.0
    %s2131 = vtos %v2130
    %s2132 = smul.f32 %s2129, %s2131
    %s2133 = sadd.f32 %s1945, %s2132
    %v2134 = vstv %s2133
    %vm2135 = vcmask 0
    %2136 = vst.msk [vmem:[#allocation2] sm:$0x1] %vm2135, %v2134
    // Predicated region
    $region34: #{tpu_custom_call.1} parent=1 // pred_check
      _
    $region35: #{tpu_custom_call.1} parent=1 // pred_check_branch
      %2138 = sbr.rel (0) target = $region37
    $region36: #{tpu_custom_call.1} parent=1 // pred_region
      %s2140 = ssub.s32 16, 16
      %2141 = vsyncadd [#allocation3], %s2140
      %s2143 = sshll.u32 [#allocation2], 4
      %s2144 = int_to_ptr.vmem [resolvable:$true] %s2143
      %2146 = dma.vmem_to_hbm [thread:$0]  %s2144, 16, %s8, [#allocation3]
    $region37: #{tpu_custom_call.1} parent=1 // pred_fallthru
      _
    // Predicated region
    $region38: #{tpu_custom_call.1} parent=1 // pred_check
      _
    $region39: #{tpu_custom_call.1} parent=1 // pred_check_branch
      %2148 = sbr.rel (0) target = $region41
    $region40: #{tpu_custom_call.1} parent=1 // pred_region
      %2149 = dma.done [#allocation3], 16
    $region41: #{tpu_custom_call.1} parent=1 // pred_fallthru
      _
    %2150 = vsyncpa [#allocation3], 1

</llo_original>
